<compile_context>
chip_gen: v7x
topology: tpu7x:2x2x1
jax: 0.10.0
libtpu: 0.0.40
codegen_flags: <defaults>
</compile_context>

<pallas_src>
import functools

import numpy as np
import jax
import jax.numpy as jnp
from jax import lax
from jax.experimental import pallas as pl
from jax.experimental.pallas import tpu as pltpu


# ------------------------------ slab layout ----------------------------------

def _round_up(x, m):
    return ((x + m - 1) // m) * m


def _slab_layout(D, H, L):
    """Static row offsets of each transposed weight inside the packed slab."""
    layer_offs = []
    r = 0
    for l in range(L):
        din = D if l == 0 else H
        wih_off = r
        r += _round_up(din, 8)
        whh_off = r
        r += _round_up(H, 8)
        layer_offs.append((wih_off, whh_off))
    fc_off = r
    r += _round_up(H, 8)
    return layer_offs, fc_off, r


# ----------------------------- Pallas kernel ---------------------------------

def _make_fused_lstm_kernel(T, B, D, H, L, lanes, layer_offs, fc_off):
    """Fused kernel: all LSTM layers + softmax + FC, operands pre-packed."""
    GW = 4 * H

    def kernel(x_ref, w_ref, b_ref, out_ref, gx_ref):
        x = x_ref[...]                                    # (T*B, D) time-major
        fc_w = w_ref[fc_off:fc_off + H, :]                # (H, lanes), 0-padded
        fc_b = b_ref[L:L + 1, :]                          # (1, lanes), 0-padded

        for l in range(L):
            wih_off, whh_off = layer_offs[l]
            whh = w_ref[whh_off:whh_off + H, :GW]         # (H, 4H)

            if l == 0:
                # Hoisted input projection for ALL timesteps of layer 0:
                # one MXU matmul, bias folded in once.
                wih0 = w_ref[wih_off:wih_off + D, :GW]    # (D, 4H)
                b0 = b_ref[0:1, :GW]                      # (1, 4H)
                gx0 = jnp.dot(x, wih0,
                              preferred_element_type=jnp.float32) + b0

            if l + 1 < L:
                nx_wih_off, _ = layer_offs[l + 1]
                wih_next = w_ref[nx_wih_off:nx_wih_off + H, :GW]
                b_next = b_ref[l + 1:l + 2, :GW]

            # ping-pong bases inside the (2*T*B, 4H) gate-projection scratch
            read_base = (l % 2) * (T * B)
            write_base = ((l + 1) % 2) * (T * B)

            h = None
            c = None
            for t in range(T):                            # fully unrolled
                if l == 0:
                    gx_t = gx0[t * B:(t + 1) * B, :]
                else:
                    gx_t = gx_ref[read_base + t * B:read_base + (t + 1) * B, :]

                if t == 0:
                    gates = gx_t                          # h0 = 0: skip matmul
                else:
                    gates = gx_t + jnp.dot(
                        h, whh, preferred_element_type=jnp.float32)

                # Single EUP pass over the whole gate vector; g-gate columns of
                # the weights/bias were pre-scaled by 2, so
                # tanh(z) = 2*sigmoid(2z) - 1 comes from the same sigmoid.
                a = jax.nn.sigmoid(gates)
                i_g = a[:, 0 * H:1 * H]
                f_g = a[:, 1 * H:2 * H]
                g_g = 2.0 * a[:, 2 * H:3 * H] - 1.0
                o_g = a[:, 3 * H:4 * H]

                c = i_g * g_g if t == 0 else f_g * c + i_g * g_g  # c0 = 0
                h = o_g * jnp.tanh(c)

                if l + 1 < L:
                    # Incremental input projection for the next layer: overlaps
                    # with this layer's EUP-bound recurrence, and the full
                    # (T*B,H) hidden sequence is never assembled.
                    gx_ref[write_base + t * B:write_base + (t + 1) * B, :] = (
                        jnp.dot(h, wih_next,
                                preferred_element_type=jnp.float32) + b_next)

            # finalize layer l: softmax(final h) over hidden dim, then FC,
            # written straight into the layer's output rows (lane-dense).
            m = jnp.max(h, axis=1, keepdims=True)
            e = jnp.exp(h - m)
            p = e * pl.reciprocal(jnp.sum(e, axis=1, keepdims=True), approx=True)
            out_ref[l * B:(l + 1) * B, :] = (
                jnp.dot(p, fc_w, preferred_element_type=jnp.float32) + fc_b)

    return kernel


# ------------------------------ JAX wrapper ----------------------------------

def prepare_params(params):
    """One-time re-layout of the PyTorch-style parameters into packed slabs."""
    L = len(params["lstm"])
    H = int(params["lstm"][0]["w_hh"].shape[1])
    D = int(params["lstm"][0]["w_ih"].shape[1])
    C = int(params["fc_w"].shape[0])
    GW = 4 * H
    lanes = max(GW, _round_up(max(C, 1), 128))
    layer_offs, fc_off, total_rows = _slab_layout(D, H, L)

    w_slab = np.zeros((total_rows, lanes), np.float32)
    b_slab = np.zeros((L + 1, lanes), np.float32)

    for l, lp in enumerate(params["lstm"]):
        din = D if l == 0 else H
        wih_t = np.array(lp["w_ih"], np.float32).T.copy()   # (din, 4H)
        whh_t = np.array(lp["w_hh"], np.float32).T.copy()   # (H, 4H)
        b = np.array(lp["b_ih"], np.float32) + np.array(lp["b_hh"], np.float32)
        # pre-scale g-gate block by 2 for the tanh(z) = 2*sigmoid(2z)-1 trick
        wih_t[:, 2 * H:3 * H] *= 2.0
        whh_t[:, 2 * H:3 * H] *= 2.0
        b[2 * H:3 * H] *= 2.0
        wih_off, whh_off = layer_offs[l]
        w_slab[wih_off:wih_off + din, :GW] = wih_t
        w_slab[whh_off:whh_off + H, :GW] = whh_t
        b_slab[l, :GW] = b

    fc_w_t = np.array(params["fc_w"], np.float32).T          # (H, C)
    w_slab[fc_off:fc_off + H, :C] = fc_w_t
    b_slab[L, :C] = np.array(params["fc_b"], np.float32)

    return dict(
        w_slab=jnp.asarray(w_slab),
        b_slab=jnp.asarray(b_slab),
        dims=(D, H, L, C, lanes),
    )


@functools.partial(jax.jit, static_argnames=("dims",))
def _fused_forward(x, w_slab, b_slab, *, dims):
    D, H, L, C, lanes = dims
    B, T, _ = x.shape
    # time-major flatten: row order [t0 b0, t0 b1, t1 b0, ...]
    x_flat = jnp.transpose(x, (1, 0, 2)).reshape(T * B, D).astype(jnp.float32)
    layer_offs, fc_off, _ = _slab_layout(D, H, L)
    kernel = _make_fused_lstm_kernel(T, B, D, H, L, lanes, layer_offs, fc_off)
    vmem = pl.BlockSpec(memory_space=pltpu.MemorySpace.VMEM)
    out = pl.pallas_call(
        kernel,
        out_shape=jax.ShapeDtypeStruct((L * B, lanes), jnp.float32),
        in_specs=[vmem, vmem, vmem],
        out_specs=vmem,
        # ping-pong gate-projection scratch for the inter-layer hand-off
        scratch_shapes=[pltpu.VMEM((2 * T * B, 4 * H), jnp.float32)],
    )(x_flat, w_slab, b_slab)
    # output was lane-padded to `lanes`; real classes are the first C columns
    return out[:, :C]
    # Note (v7x): at B=2 there is nothing to grid over; if batch grows, add a
    # batch grid with dimension_semantics=("parallel",) to use both TCs.


def lstm_model_forward(x, prepped):
    """x: (B, T, input_size), batch_first like the PyTorch module."""
    return _fused_forward(x, prepped["w_slab"], prepped["b_slab"],
                          dims=prepped["dims"])


# ------------------------------ reference ------------------------------------

def _ref_lstm_layer(x_seq, w_ih, w_hh, b_ih, b_hh):
    T, B, _ = x_seq.shape
    H = w_hh.shape[1]

    def step(carry, x_t):
        h, c = carry
        gates = x_t @ w_ih.T + h @ w_hh.T + b_ih + b_hh
        i, f, g, o = jnp.split(gates, 4, axis=1)
        c = jax.nn.sigmoid(f) * c + jax.nn.sigmoid(i) * jnp.tanh(g)
        h = jax.nn.sigmoid(o) * jnp.tanh(c)
        return (h, c), h

    (h, _), ys = lax.scan(step, (jnp.zeros((B, H)), jnp.zeros((B, H))), x_seq)
    return ys, h


def ref_forward(x, params):
    x_seq = jnp.transpose(x, (1, 0, 2)).astype(jnp.float32)
    h_finals = []
    layer_in = x_seq
    for lp in params["lstm"]:
        ys, h = _ref_lstm_layer(layer_in, lp["w_ih"], lp["w_hh"],
                                lp["b_ih"], lp["b_hh"])
        h_finals.append(h)
        layer_in = ys
    h_output = jnp.concatenate(h_finals, axis=0)
    m = jnp.max(h_output, axis=1, keepdims=True)
    e = jnp.exp(h_output - m)
    p = e / jnp.sum(e, axis=1, keepdims=True)
    return p @ params["fc_w"].T + params["fc_b"]


# ------------------------------- parameters ----------------------------------

def init_params(key, num_classes, input_size, hidden_size, num_layers):
    """Deterministic init (uniform(-1/sqrt(H), 1/sqrt(H)), same as PyTorch)."""
    bound = 1.0 / np.sqrt(hidden_size)
    layers = []
    for l in range(num_layers):
        d_in = input_size if l == 0 else hidden_size
        key, k1, k2, k3, k4 = jax.random.split(key, 5)
        layers.append(dict(
            w_ih=jax.random.uniform(k1, (4 * hidden_size, d_in),
                                    jnp.float32, -bound, bound),
            w_hh=jax.random.uniform(k2, (4 * hidden_size, hidden_size),
                                    jnp.float32, -bound, bound),
            b_ih=jax.random.uniform(k3, (4 * hidden_size,),
                                    jnp.float32, -bound, bound),
            b_hh=jax.random.uniform(k4, (4 * hidden_size,),
                                    jnp.float32, -bound, bound),
        ))
    key, k5, k6 = jax.random.split(key, 3)
    fc_bound = 1.0 / np.sqrt(hidden_size)
    fc_w = jax.random.uniform(k5, (num_classes, hidden_size),
                              jnp.float32, -fc_bound, fc_bound)
    fc_b = jax.random.uniform(k6, (num_classes,),
                              jnp.float32, -fc_bound, fc_bound)
    return dict(lstm=layers, fc_w=fc_w, fc_b=fc_b)


# --------------------------------- main ---------------------------------------

if __name__ == "__main__":
    num_classes, input_size, hidden_size, num_layers = 8, 16, 32, 2
    batch, seq = 2, 8

    key = jax.random.PRNGKey(0)
    key, kx = jax.random.split(key)
    x = jax.random.normal(kx, (batch, seq, input_size), jnp.float32)
    params = init_params(key, num_classes, input_size, hidden_size, num_layers)

    prepped = prepare_params(params)          # one-time parameter re-layout
    out = jax.block_until_ready(lstm_model_forward(x, prepped))

    ref = jax.block_until_ready(ref_forward(x, params))
    assert out.shape == (num_layers * batch, num_classes)
    np.testing.assert_allclose(np.asarray(out), np.asarray(ref),
                               atol=1e-3, rtol=1e-3)

    print("KERNEL_OK")
</pallas_src>

<mosaic_0001>
module attributes {stable_mosaic.version = 11 : i64} {
  func.func @kernel(%arg0: memref<16x16xf32, #tpu.memory_space<vmem>>, %arg1: memref<144x128xf32, #tpu.memory_space<vmem>>, %arg2: memref<3x128xf32, #tpu.memory_space<vmem>>, %arg3: memref<4x128xf32, #tpu.memory_space<vmem>>, %arg4: memref<32x128xf32, #tpu.memory_space<vmem>>) attributes {dimension_semantics = [], scalar_prefetch = 0 : i64, scratch_operands = 1 : i64, tpu.core_type = #tpu.core_type<tc>} {
    %c0 = arith.constant 0 : index
    %c0_0 = arith.constant 0 : index
    %0 = vector.load %arg0[%c0, %c0_0] : memref<16x16xf32, #tpu.memory_space<vmem>>, vector<16x16xf32>
    %c112 = arith.constant 112 : index
    %c0_1 = arith.constant 0 : index
    %1 = vector.load %arg1[%c112, %c0_1] : memref<144x128xf32, #tpu.memory_space<vmem>>, vector<32x128xf32>
    %c2 = arith.constant 2 : index
    %c0_2 = arith.constant 0 : index
    %2 = vector.load %arg2[%c2, %c0_2] : memref<3x128xf32, #tpu.memory_space<vmem>>, vector<1x128xf32>
    %c16 = arith.constant 16 : index
    %c0_3 = arith.constant 0 : index
    %3 = vector.load %arg1[%c16, %c0_3] : memref<144x128xf32, #tpu.memory_space<vmem>>, vector<32x128xf32>
    %c0_4 = arith.constant 0 : index
    %c0_5 = arith.constant 0 : index
    %4 = vector.load %arg1[%c0_4, %c0_5] : memref<144x128xf32, #tpu.memory_space<vmem>>, vector<16x128xf32>
    %c0_6 = arith.constant 0 : index
    %c0_7 = arith.constant 0 : index
    %5 = vector.load %arg2[%c0_6, %c0_7] : memref<3x128xf32, #tpu.memory_space<vmem>>, vector<1x128xf32>
    %cst = arith.constant dense<0.000000e+00> : vector<16x128xf32>
    %6 = tpu.matmul %0, %4, %cst {dimension_numbers = #tpu.dot_dimension_numbers<[1], [0], [0], [1], [0, 0, 1, 1], [], []>} : vector<16x16xf32>, vector<16x128xf32>, vector<16x128xf32> -> vector<16x128xf32>
    %7 = vector.broadcast %5 : vector<1x128xf32> to vector<16x128xf32>
    %8 = arith.addf %6, %7 : vector<16x128xf32>
    %c48 = arith.constant 48 : index
    %c0_8 = arith.constant 0 : index
    %9 = vector.load %arg1[%c48, %c0_8] : memref<144x128xf32, #tpu.memory_space<vmem>>, vector<32x128xf32>
    %c1 = arith.constant 1 : index
    %c0_9 = arith.constant 0 : index
    %10 = vector.load %arg2[%c1, %c0_9] : memref<3x128xf32, #tpu.memory_space<vmem>>, vector<1x128xf32>
    %11 = vector.extract_strided_slice %8 {offsets = [0, 0], sizes = [2, 128], strides = [1, 1]} : vector<16x128xf32> to vector<2x128xf32>
    %12 = arith.negf %11 : vector<2x128xf32>
    %13 = math.exp %12 : vector<2x128xf32>
    %cst_10 = arith.constant 1.000000e+00 : f32
    %14 = vector.broadcast %cst_10 : f32 to vector<2x128xf32>
    %15 = arith.addf %14, %13 : vector<2x128xf32>
    %16 = arith.divf %14, %15 : vector<2x128xf32>
    %17 = vector.extract_strided_slice %16 {offsets = [0, 0], sizes = [2, 32], strides = [1, 1]} : vector<2x128xf32> to vector<2x32xf32>
    %18 = vector.extract_strided_slice %16 {offsets = [0, 64], sizes = [2, 32], strides = [1, 1]} : vector<2x128xf32> to vector<2x32xf32>
    %cst_11 = arith.constant 2.000000e+00 : f32
    %19 = vector.broadcast %cst_11 : f32 to vector<2x32xf32>
    %20 = arith.mulf %19, %18 : vector<2x32xf32>
    %cst_12 = arith.constant 1.000000e+00 : f32
    %21 = vector.broadcast %cst_12 : f32 to vector<2x32xf32>
    %22 = arith.subf %20, %21 : vector<2x32xf32>
    %23 = vector.extract_strided_slice %16 {offsets = [0, 96], sizes = [2, 32], strides = [1, 1]} : vector<2x128xf32> to vector<2x32xf32>
    %24 = arith.mulf %17, %22 : vector<2x32xf32>
    %25 = math.tanh %24 : vector<2x32xf32>
    %26 = arith.mulf %23, %25 : vector<2x32xf32>
    %cst_13 = arith.constant dense<0.000000e+00> : vector<2x128xf32>
    %27 = tpu.matmul %26, %9, %cst_13 {dimension_numbers = #tpu.dot_dimension_numbers<[1], [0], [0], [1], [0, 0, 1, 1], [], []>} : vector<2x32xf32>, vector<32x128xf32>, vector<2x128xf32> -> vector<2x128xf32>
    %28 = vector.broadcast %10 : vector<1x128xf32> to vector<2x128xf32>
    %29 = arith.addf %27, %28 : vector<2x128xf32>
    %c16_14 = arith.constant 16 : index
    %c0_15 = arith.constant 0 : index
    %30 = vector.load %arg4[%c16_14, %c0_15] : memref<32x128xf32, #tpu.memory_space<vmem>>, vector<2x128xf32>
    tpu.vector_store %arg4[%c16_14, %c0_15], %29 {strides = array<i32>} : memref<32x128xf32, #tpu.memory_space<vmem>>, vector<2x128xf32>,
    %31 = vector.extract_strided_slice %8 {offsets = [2, 0], sizes = [2, 128], strides = [1, 1]} : vector<16x128xf32> to vector<2x128xf32>
    %cst_16 = arith.constant dense<0.000000e+00> : vector<2x128xf32>
    %32 = tpu.matmul %26, %3, %cst_16 {dimension_numbers = #tpu.dot_dimension_numbers<[1], [0], [0], [1], [0, 0, 1, 1], [], []>} : vector<2x32xf32>, vector<32x128xf32>, vector<2x128xf32> -> vector<2x128xf32>
    %33 = arith.addf %31, %32 : vector<2x128xf32>
    %34 = arith.negf %33 : vector<2x128xf32>
    %35 = math.exp %34 : vector<2x128xf32>
    %cst_17 = arith.constant 1.000000e+00 : f32
    %36 = vector.broadcast %cst_17 : f32 to vector<2x128xf32>
    %37 = arith.addf %36, %35 : vector<2x128xf32>
    %38 = arith.divf %36, %37 : vector<2x128xf32>
    %39 = vector.extract_strided_slice %38 {offsets = [0, 0], sizes = [2, 32], strides = [1, 1]} : vector<2x128xf32> to vector<2x32xf32>
    %40 = vector.extract_strided_slice %38 {offsets = [0, 32], sizes = [2, 32], strides = [1, 1]} : vector<2x128xf32> to vector<2x32xf32>
    %41 = vector.extract_strided_slice %38 {offsets = [0, 64], sizes = [2, 32], strides = [1, 1]} : vector<2x128xf32> to vector<2x32xf32>
    %cst_18 = arith.constant 2.000000e+00 : f32
    %42 = vector.broadcast %cst_18 : f32 to vector<2x32xf32>
    %43 = arith.mulf %42, %41 : vector<2x32xf32>
    %cst_19 = arith.constant 1.000000e+00 : f32
    %44 = vector.broadcast %cst_19 : f32 to vector<2x32xf32>
    %45 = arith.subf %43, %44 : vector<2x32xf32>
    %46 = vector.extract_strided_slice %38 {offsets = [0, 96], sizes = [2, 32], strides = [1, 1]} : vector<2x128xf32> to vector<2x32xf32>
    %47 = arith.mulf %40, %24 : vector<2x32xf32>
    %48 = arith.mulf %39, %45 : vector<2x32xf32>
    %49 = arith.addf %47, %48 : vector<2x32xf32>
    %50 = math.tanh %49 : vector<2x32xf32>
    %51 = arith.mulf %46, %50 : vector<2x32xf32>
    %cst_20 = arith.constant dense<0.000000e+00> : vector<2x128xf32>
    %52 = tpu.matmul %51, %9, %cst_20 {dimension_numbers = #tpu.dot_dimension_numbers<[1], [0], [0], [1], [0, 0, 1, 1], [], []>} : vector<2x32xf32>, vector<32x128xf32>, vector<2x128xf32> -> vector<2x128xf32>
    %53 = vector.broadcast %10 : vector<1x128xf32> to vector<2x128xf32>
    %54 = arith.addf %52, %53 : vector<2x128xf32>
    %c18 = arith.constant 18 : index
    %c0_21 = arith.constant 0 : index
    %55 = vector.load %arg4[%c18, %c0_21] : memref<32x128xf32, #tpu.memory_space<vmem>>, vector<2x128xf32>
    tpu.vector_store %arg4[%c18, %c0_21], %54 {strides = array<i32>} : memref<32x128xf32, #tpu.memory_space<vmem>>, vector<2x128xf32>,
    %56 = vector.extract_strided_slice %8 {offsets = [4, 0], sizes = [2, 128], strides = [1, 1]} : vector<16x128xf32> to vector<2x128xf32>
    %cst_22 = arith.constant dense<0.000000e+00> : vector<2x128xf32>
    %57 = tpu.matmul %51, %3, %cst_22 {dimension_numbers = #tpu.dot_dimension_numbers<[1], [0], [0], [1], [0, 0, 1, 1], [], []>} : vector<2x32xf32>, vector<32x128xf32>, vector<2x128xf32> -> vector<2x128xf32>
    %58 = arith.addf %56, %57 : vector<2x128xf32>
    %59 = arith.negf %58 : vector<2x128xf32>
    %60 = math.exp %59 : vector<2x128xf32>
    %cst_23 = arith.constant 1.000000e+00 : f32
    %61 = vector.broadcast %cst_23 : f32 to vector<2x128xf32>
    %62 = arith.addf %61, %60 : vector<2x128xf32>
    %63 = arith.divf %61, %62 : vector<2x128xf32>
    %64 = vector.extract_strided_slice %63 {offsets = [0, 0], sizes = [2, 32], strides = [1, 1]} : vector<2x128xf32> to vector<2x32xf32>
    %65 = vector.extract_strided_slice %63 {offsets = [0, 32], sizes = [2, 32], strides = [1, 1]} : vector<2x128xf32> to vector<2x32xf32>
    %66 = vector.extract_strided_slice %63 {offsets = [0, 64], sizes = [2, 32], strides = [1, 1]} : vector<2x128xf32> to vector<2x32xf32>
    %cst_24 = arith.constant 2.000000e+00 : f32
    %67 = vector.broadcast %cst_24 : f32 to vector<2x32xf32>
    %68 = arith.mulf %67, %66 : vector<2x32xf32>
    %cst_25 = arith.constant 1.000000e+00 : f32
    %69 = vector.broadcast %cst_25 : f32 to vector<2x32xf32>
    %70 = arith.subf %68, %69 : vector<2x32xf32>
    %71 = vector.extract_strided_slice %63 {offsets = [0, 96], sizes = [2, 32], strides = [1, 1]} : vector<2x128xf32> to vector<2x32xf32>
    %72 = arith.mulf %65, %49 : vector<2x32xf32>
    %73 = arith.mulf %64, %70 : vector<2x32xf32>
    %74 = arith.addf %72, %73 : vector<2x32xf32>
    %75 = math.tanh %74 : vector<2x32xf32>
    %76 = arith.mulf %71, %75 : vector<2x32xf32>
    %cst_26 = arith.constant dense<0.000000e+00> : vector<2x128xf32>
    %77 = tpu.matmul %76, %9, %cst_26 {dimension_numbers = #tpu.dot_dimension_numbers<[1], [0], [0], [1], [0, 0, 1, 1], [], []>} : vector<2x32xf32>, vector<32x128xf32>, vector<2x128xf32> -> vector<2x128xf32>
    %78 = vector.broadcast %10 : vector<1x128xf32> to vector<2x128xf32>
    %79 = arith.addf %77, %78 : vector<2x128xf32>
    %c20 = arith.constant 20 : index
    %c0_27 = arith.constant 0 : index
    %80 = vector.load %arg4[%c20, %c0_27] : memref<32x128xf32, #tpu.memory_space<vmem>>, vector<2x128xf32>
    tpu.vector_store %arg4[%c20, %c0_27], %79 {strides = array<i32>} : memref<32x128xf32, #tpu.memory_space<vmem>>, vector<2x128xf32>,
    %81 = vector.extract_strided_slice %8 {offsets = [6, 0], sizes = [2, 128], strides = [1, 1]} : vector<16x128xf32> to vector<2x128xf32>
    %cst_28 = arith.constant dense<0.000000e+00> : vector<2x128xf32>
    %82 = tpu.matmul %76, %3, %cst_28 {dimension_numbers = #tpu.dot_dimension_numbers<[1], [0], [0], [1], [0, 0, 1, 1], [], []>} : vector<2x32xf32>, vector<32x128xf32>, vector<2x128xf32> -> vector<2x128xf32>
    %83 = arith.addf %81, %82 : vector<2x128xf32>
    %84 = arith.negf %83 : vector<2x128xf32>
    %85 = math.exp %84 : vector<2x128xf32>
    %cst_29 = arith.constant 1.000000e+00 : f32
    %86 = vector.broadcast %cst_29 : f32 to vector<2x128xf32>
    %87 = arith.addf %86, %85 : vector<2x128xf32>
    %88 = arith.divf %86, %87 : vector<2x128xf32>
    %89 = vector.extract_strided_slice %88 {offsets = [0, 0], sizes = [2, 32], strides = [1, 1]} : vector<2x128xf32> to vector<2x32xf32>
    %90 = vector.extract_strided_slice %88 {offsets = [0, 32], sizes = [2, 32], strides = [1, 1]} : vector<2x128xf32> to vector<2x32xf32>
    %91 = vector.extract_strided_slice %88 {offsets = [0, 64], sizes = [2, 32], strides = [1, 1]} : vector<2x128xf32> to vector<2x32xf32>
    %cst_30 = arith.constant 2.000000e+00 : f32
    %92 = vector.broadcast %cst_30 : f32 to vector<2x32xf32>
    %93 = arith.mulf %92, %91 : vector<2x32xf32>
    %cst_31 = arith.constant 1.000000e+00 : f32
    %94 = vector.broadcast %cst_31 : f32 to vector<2x32xf32>
    %95 = arith.subf %93, %94 : vector<2x32xf32>
    %96 = vector.extract_strided_slice %88 {offsets = [0, 96], sizes = [2, 32], strides = [1, 1]} : vector<2x128xf32> to vector<2x32xf32>
    %97 = arith.mulf %90, %74 : vector<2x32xf32>
    %98 = arith.mulf %89, %95 : vector<2x32xf32>
    %99 = arith.addf %97, %98 : vector<2x32xf32>
    %100 = math.tanh %99 : vector<2x32xf32>
    %101 = arith.mulf %96, %100 : vector<2x32xf32>
    %cst_32 = arith.constant dense<0.000000e+00> : vector<2x128xf32>
    %102 = tpu.matmul %101, %9, %cst_32 {dimension_numbers = #tpu.dot_dimension_numbers<[1], [0], [0], [1], [0, 0, 1, 1], [], []>} : vector<2x32xf32>, vector<32x128xf32>, vector<2x128xf32> -> vector<2x128xf32>
    %103 = vector.broadcast %10 : vector<1x128xf32> to vector<2x128xf32>
    %104 = arith.addf %102, %103 : vector<2x128xf32>
    %c22 = arith.constant 22 : index
    %c0_33 = arith.constant 0 : index
    %105 = vector.load %arg4[%c22, %c0_33] : memref<32x128xf32, #tpu.memory_space<vmem>>, vector<2x128xf32>
    tpu.vector_store %arg4[%c22, %c0_33], %104 {strides = array<i32>} : memref<32x128xf32, #tpu.memory_space<vmem>>, vector<2x128xf32>,
    %106 = vector.extract_strided_slice %8 {offsets = [8, 0], sizes = [2, 128], strides = [1, 1]} : vector<16x128xf32> to vector<2x128xf32>
    %cst_34 = arith.constant dense<0.000000e+00> : vector<2x128xf32>
    %107 = tpu.matmul %101, %3, %cst_34 {dimension_numbers = #tpu.dot_dimension_numbers<[1], [0], [0], [1], [0, 0, 1, 1], [], []>} : vector<2x32xf32>, vector<32x128xf32>, vector<2x128xf32> -> vector<2x128xf32>
    %108 = arith.addf %106, %107 : vector<2x128xf32>
    %109 = arith.negf %108 : vector<2x128xf32>
    %110 = math.exp %109 : vector<2x128xf32>
    %cst_35 = arith.constant 1.000000e+00 : f32
    %111 = vector.broadcast %cst_35 : f32 to vector<2x128xf32>
    %112 = arith.addf %111, %110 : vector<2x128xf32>
    %113 = arith.divf %111, %112 : vector<2x128xf32>
    %114 = vector.extract_strided_slice %113 {offsets = [0, 0], sizes = [2, 32], strides = [1, 1]} : vector<2x128xf32> to vector<2x32xf32>
    %115 = vector.extract_strided_slice %113 {offsets = [0, 32], sizes = [2, 32], strides = [1, 1]} : vector<2x128xf32> to vector<2x32xf32>
    %116 = vector.extract_strided_slice %113 {offsets = [0, 64], sizes = [2, 32], strides = [1, 1]} : vector<2x128xf32> to vector<2x32xf32>
    %cst_36 = arith.constant 2.000000e+00 : f32
    %117 = vector.broadcast %cst_36 : f32 to vector<2x32xf32>
    %118 = arith.mulf %117, %116 : vector<2x32xf32>
    %cst_37 = arith.constant 1.000000e+00 : f32
    %119 = vector.broadcast %cst_37 : f32 to vector<2x32xf32>
    %120 = arith.subf %118, %119 : vector<2x32xf32>
    %121 = vector.extract_strided_slice %113 {offsets = [0, 96], sizes = [2, 32], strides = [1, 1]} : vector<2x128xf32> to vector<2x32xf32>
    %122 = arith.mulf %115, %99 : vector<2x32xf32>
    %123 = arith.mulf %114, %120 : vector<2x32xf32>
    %124 = arith.addf %122, %123 : vector<2x32xf32>
    %125 = math.tanh %124 : vector<2x32xf32>
    %126 = arith.mulf %121, %125 : vector<2x32xf32>
    %cst_38 = arith.constant dense<0.000000e+00> : vector<2x128xf32>
    %127 = tpu.matmul %126, %9, %cst_38 {dimension_numbers = #tpu.dot_dimension_numbers<[1], [0], [0], [1], [0, 0, 1, 1], [], []>} : vector<2x32xf32>, vector<32x128xf32>, vector<2x128xf32> -> vector<2x128xf32>
    %128 = vector.broadcast %10 : vector<1x128xf32> to vector<2x128xf32>
    %129 = arith.addf %127, %128 : vector<2x128xf32>
    %c24 = arith.constant 24 : index
    %c0_39 = arith.constant 0 : index
    %130 = vector.load %arg4[%c24, %c0_39] : memref<32x128xf32, #tpu.memory_space<vmem>>, vector<2x128xf32>
    tpu.vector_store %arg4[%c24, %c0_39], %129 {strides = array<i32>} : memref<32x128xf32, #tpu.memory_space<vmem>>, vector<2x128xf32>,
    %131 = vector.extract_strided_slice %8 {offsets = [10, 0], sizes = [2, 128], strides = [1, 1]} : vector<16x128xf32> to vector<2x128xf32>
    %cst_40 = arith.constant dense<0.000000e+00> : vector<2x128xf32>
    %132 = tpu.matmul %126, %3, %cst_40 {dimension_numbers = #tpu.dot_dimension_numbers<[1], [0], [0], [1], [0, 0, 1, 1], [], []>} : vector<2x32xf32>, vector<32x128xf32>, vector<2x128xf32> -> vector<2x128xf32>
    %133 = arith.addf %131, %132 : vector<2x128xf32>
    %134 = arith.negf %133 : vector<2x128xf32>
    %135 = math.exp %134 : vector<2x128xf32>
    %cst_41 = arith.constant 1.000000e+00 : f32
    %136 = vector.broadcast %cst_41 : f32 to vector<2x128xf32>
    %137 = arith.addf %136, %135 : vector<2x128xf32>
    %138 = arith.divf %136, %137 : vector<2x128xf32>
    %139 = vector.extract_strided_slice %138 {offsets = [0, 0], sizes = [2, 32], strides = [1, 1]} : vector<2x128xf32> to vector<2x32xf32>
    %140 = vector.extract_strided_slice %138 {offsets = [0, 32], sizes = [2, 32], strides = [1, 1]} : vector<2x128xf32> to vector<2x32xf32>
    %141 = vector.extract_strided_slice %138 {offsets = [0, 64], sizes = [2, 32], strides = [1, 1]} : vector<2x128xf32> to vector<2x32xf32>
    %cst_42 = arith.constant 2.000000e+00 : f32
    %142 = vector.broadcast %cst_42 : f32 to vector<2x32xf32>
    %143 = arith.mulf %142, %141 : vector<2x32xf32>
    %cst_43 = arith.constant 1.000000e+00 : f32
    %144 = vector.broadcast %cst_43 : f32 to vector<2x32xf32>
    %145 = arith.subf %143, %144 : vector<2x32xf32>
    %146 = vector.extract_strided_slice %138 {offsets = [0, 96], sizes = [2, 32], strides = [1, 1]} : vector<2x128xf32> to vector<2x32xf32>
    %147 = arith.mulf %140, %124 : vector<2x32xf32>
    %148 = arith.mulf %139, %145 : vector<2x32xf32>
    %149 = arith.addf %147, %148 : vector<2x32xf32>
    %150 = math.tanh %149 : vector<2x32xf32>
    %151 = arith.mulf %146, %150 : vector<2x32xf32>
    %cst_44 = arith.constant dense<0.000000e+00> : vector<2x128xf32>
    %152 = tpu.matmul %151, %9, %cst_44 {dimension_numbers = #tpu.dot_dimension_numbers<[1], [0], [0], [1], [0, 0, 1, 1], [], []>} : vector<2x32xf32>, vector<32x128xf32>, vector<2x128xf32> -> vector<2x128xf32>
    %153 = vector.broadcast %10 : vector<1x128xf32> to vector<2x128xf32>
    %154 = arith.addf %152, %153 : vector<2x128xf32>
    %c26 = arith.constant 26 : index
    %c0_45 = arith.constant 0 : index
    %155 = vector.load %arg4[%c26, %c0_45] : memref<32x128xf32, #tpu.memory_space<vmem>>, vector<2x128xf32>
    tpu.vector_store %arg4[%c26, %c0_45], %154 {strides = array<i32>} : memref<32x128xf32, #tpu.memory_space<vmem>>, vector<2x128xf32>,
    %156 = vector.extract_strided_slice %8 {offsets = [12, 0], sizes = [2, 128], strides = [1, 1]} : vector<16x128xf32> to vector<2x128xf32>
    %cst_46 = arith.constant dense<0.000000e+00> : vector<2x128xf32>
    %157 = tpu.matmul %151, %3, %cst_46 {dimension_numbers = #tpu.dot_dimension_numbers<[1], [0], [0], [1], [0, 0, 1, 1], [], []>} : vector<2x32xf32>, vector<32x128xf32>, vector<2x128xf32> -> vector<2x128xf32>
    %158 = arith.addf %156, %157 : vector<2x128xf32>
    %159 = arith.negf %158 : vector<2x128xf32>
    %160 = math.exp %159 : vector<2x128xf32>
    %cst_47 = arith.constant 1.000000e+00 : f32
    %161 = vector.broadcast %cst_47 : f32 to vector<2x128xf32>
    %162 = arith.addf %161, %160 : vector<2x128xf32>
    %163 = arith.divf %161, %162 : vector<2x128xf32>
    %164 = vector.extract_strided_slice %163 {offsets = [0, 0], sizes = [2, 32], strides = [1, 1]} : vector<2x128xf32> to vector<2x32xf32>
    %165 = vector.extract_strided_slice %163 {offsets = [0, 32], sizes = [2, 32], strides = [1, 1]} : vector<2x128xf32> to vector<2x32xf32>
    %166 = vector.extract_strided_slice %163 {offsets = [0, 64], sizes = [2, 32], strides = [1, 1]} : vector<2x128xf32> to vector<2x32xf32>
    %cst_48 = arith.constant 2.000000e+00 : f32
    %167 = vector.broadcast %cst_48 : f32 to vector<2x32xf32>
    %168 = arith.mulf %167, %166 : vector<2x32xf32>
    %cst_49 = arith.constant 1.000000e+00 : f32
    %169 = vector.broadcast %cst_49 : f32 to vector<2x32xf32>
    %170 = arith.subf %168, %169 : vector<2x32xf32>
    %171 = vector.extract_strided_slice %163 {offsets = [0, 96], sizes = [2, 32], strides = [1, 1]} : vector<2x128xf32> to vector<2x32xf32>
    %172 = arith.mulf %165, %149 : vector<2x32xf32>
    %173 = arith.mulf %164, %170 : vector<2x32xf32>
    %174 = arith.addf %172, %173 : vector<2x32xf32>
    %175 = math.tanh %174 : vector<2x32xf32>
    %176 = arith.mulf %171, %175 : vector<2x32xf32>
    %cst_50 = arith.constant dense<0.000000e+00> : vector<2x128xf32>
    %177 = tpu.matmul %176, %9, %cst_50 {dimension_numbers = #tpu.dot_dimension_numbers<[1], [0], [0], [1], [0, 0, 1, 1], [], []>} : vector<2x32xf32>, vector<32x128xf32>, vector<2x128xf32> -> vector<2x128xf32>
    %178 = vector.broadcast %10 : vector<1x128xf32> to vector<2x128xf32>
    %179 = arith.addf %177, %178 : vector<2x128xf32>
    %c28 = arith.constant 28 : index
    %c0_51 = arith.constant 0 : index
    %180 = vector.load %arg4[%c28, %c0_51] : memref<32x128xf32, #tpu.memory_space<vmem>>, vector<2x128xf32>
    tpu.vector_store %arg4[%c28, %c0_51], %179 {strides = array<i32>} : memref<32x128xf32, #tpu.memory_space<vmem>>, vector<2x128xf32>,
    %181 = vector.extract_strided_slice %8 {offsets = [14, 0], sizes = [2, 128], strides = [1, 1]} : vector<16x128xf32> to vector<2x128xf32>
    %cst_52 = arith.constant dense<0.000000e+00> : vector<2x128xf32>
    %182 = tpu.matmul %176, %3, %cst_52 {dimension_numbers = #tpu.dot_dimension_numbers<[1], [0], [0], [1], [0, 0, 1, 1], [], []>} : vector<2x32xf32>, vector<32x128xf32>, vector<2x128xf32> -> vector<2x128xf32>
    %183 = arith.addf %181, %182 : vector<2x128xf32>
    %184 = arith.negf %183 : vector<2x128xf32>
    %185 = math.exp %184 : vector<2x128xf32>
    %cst_53 = arith.constant 1.000000e+00 : f32
    %186 = vector.broadcast %cst_53 : f32 to vector<2x128xf32>
    %187 = arith.addf %186, %185 : vector<2x128xf32>
    %188 = arith.divf %186, %187 : vector<2x128xf32>
    %189 = vector.extract_strided_slice %188 {offsets = [0, 0], sizes = [2, 32], strides = [1, 1]} : vector<2x128xf32> to vector<2x32xf32>
    %190 = vector.extract_strided_slice %188 {offsets = [0, 32], sizes = [2, 32], strides = [1, 1]} : vector<2x128xf32> to vector<2x32xf32>
    %191 = vector.extract_strided_slice %188 {offsets = [0, 64], sizes = [2, 32], strides = [1, 1]} : vector<2x128xf32> to vector<2x32xf32>
    %cst_54 = arith.constant 2.000000e+00 : f32
    %192 = vector.broadcast %cst_54 : f32 to vector<2x32xf32>
    %193 = arith.mulf %192, %191 : vector<2x32xf32>
    %cst_55 = arith.constant 1.000000e+00 : f32
    %194 = vector.broadcast %cst_55 : f32 to vector<2x32xf32>
    %195 = arith.subf %193, %194 : vector<2x32xf32>
    %196 = vector.extract_strided_slice %188 {offsets = [0, 96], sizes = [2, 32], strides = [1, 1]} : vector<2x128xf32> to vector<2x32xf32>
    %197 = arith.mulf %190, %174 : vector<2x32xf32>
    %198 = arith.mulf %189, %195 : vector<2x32xf32>
    %199 = arith.addf %197, %198 : vector<2x32xf32>
    %200 = math.tanh %199 : vector<2x32xf32>
    %201 = arith.mulf %196, %200 : vector<2x32xf32>
    %cst_56 = arith.constant dense<0.000000e+00> : vector<2x128xf32>
    %202 = tpu.matmul %201, %9, %cst_56 {dimension_numbers = #tpu.dot_dimension_numbers<[1], [0], [0], [1], [0, 0, 1, 1], [], []>} : vector<2x32xf32>, vector<32x128xf32>, vector<2x128xf32> -> vector<2x128xf32>
    %203 = vector.broadcast %10 : vector<1x128xf32> to vector<2x128xf32>
    %204 = arith.addf %202, %203 : vector<2x128xf32>
    %c30 = arith.constant 30 : index
    %c0_57 = arith.constant 0 : index
    %205 = vector.load %arg4[%c30, %c0_57] : memref<32x128xf32, #tpu.memory_space<vmem>>, vector<2x128xf32>
    tpu.vector_store %arg4[%c30, %c0_57], %204 {strides = array<i32>} : memref<32x128xf32, #tpu.memory_space<vmem>>, vector<2x128xf32>,
    %cst_58 = arith.constant dense<0xFF800000> : vector<2xf32>
    %206 = vector.multi_reduction <maximumf>, %201, %cst_58 [1] : vector<2x32xf32> to vector<2xf32>
    %207 = vector.shape_cast %206 : vector<2xf32> to vector<2x1xf32>
    %208 = vector.broadcast %207 : vector<2x1xf32> to vector<2x32xf32>
    %209 = arith.subf %201, %208 : vector<2x32xf32>
    %210 = math.exp %209 : vector<2x32xf32>
    %cst_59 = arith.constant dense<0.000000e+00> : vector<2xf32>
    %211 = vector.multi_reduction <add>, %210, %cst_59 [1] : vector<2x32xf32> to vector<2xf32>
    %212 = vector.shape_cast %211 : vector<2xf32> to vector<2x1xf32>
    %213 = tpu.reciprocal %212 {approx = true} : vector<2x1xf32> -> vector<2x1xf32>
    %214 = vector.broadcast %213 : vector<2x1xf32> to vector<2x32xf32>
    %215 = arith.mulf %210, %214 : vector<2x32xf32>
    %cst_60 = arith.constant dense<0.000000e+00> : vector<2x128xf32>
    %216 = tpu.matmul %215, %1, %cst_60 {dimension_numbers = #tpu.dot_dimension_numbers<[1], [0], [0], [1], [0, 0, 1, 1], [], []>} : vector<2x32xf32>, vector<32x128xf32>, vector<2x128xf32> -> vector<2x128xf32>
    %217 = vector.broadcast %2 : vector<1x128xf32> to vector<2x128xf32>
    %218 = arith.addf %216, %217 : vector<2x128xf32>
    %c0_61 = arith.constant 0 : index
    %c0_62 = arith.constant 0 : index
    %219 = vector.load %arg3[%c0_61, %c0_62] : memref<4x128xf32, #tpu.memory_space<vmem>>, vector<2x128xf32>
    tpu.vector_store %arg3[%c0_61, %c0_62], %218 {strides = array<i32>} : memref<4x128xf32, #tpu.memory_space<vmem>>, vector<2x128xf32>,
    %c80 = arith.constant 80 : index
    %c0_63 = arith.constant 0 : index
    %220 = vector.load %arg1[%c80, %c0_63] : memref<144x128xf32, #tpu.memory_space<vmem>>, vector<32x128xf32>
    %c16_64 = arith.constant 16 : index
    %c0_65 = arith.constant 0 : index
    %221 = vector.load %arg4[%c16_64, %c0_65] : memref<32x128xf32, #tpu.memory_space<vmem>>, vector<2x128xf32>
    %222 = arith.negf %221 : vector<2x128xf32>
    %223 = math.exp %222 : vector<2x128xf32>
    %cst_66 = arith.constant 1.000000e+00 : f32
    %224 = vector.broadcast %cst_66 : f32 to vector<2x128xf32>
    %225 = arith.addf %224, %223 : vector<2x128xf32>
    %226 = arith.divf %224, %225 : vector<2x128xf32>
    %227 = vector.extract_strided_slice %226 {offsets = [0, 0], sizes = [2, 32], strides = [1, 1]} : vector<2x128xf32> to vector<2x32xf32>
    %228 = vector.extract_strided_slice %226 {offsets = [0, 64], sizes = [2, 32], strides = [1, 1]} : vector<2x128xf32> to vector<2x32xf32>
    %cst_67 = arith.constant 2.000000e+00 : f32
    %229 = vector.broadcast %cst_67 : f32 to vector<2x32xf32>
    %230 = arith.mulf %229, %228 : vector<2x32xf32>
    %cst_68 = arith.constant 1.000000e+00 : f32
    %231 = vector.broadcast %cst_68 : f32 to vector<2x32xf32>
    %232 = arith.subf %230, %231 : vector<2x32xf32>
    %233 = vector.extract_strided_slice %226 {offsets = [0, 96], sizes = [2, 32], strides = [1, 1]} : vector<2x128xf32> to vector<2x32xf32>
    %234 = arith.mulf %227, %232 : vector<2x32xf32>
    %235 = math.tanh %234 : vector<2x32xf32>
    %236 = arith.mulf %233, %235 : vector<2x32xf32>
    %c18_69 = arith.constant 18 : index
    %c0_70 = arith.constant 0 : index
    %237 = vector.load %arg4[%c18_69, %c0_70] : memref<32x128xf32, #tpu.memory_space<vmem>>, vector<2x128xf32>
    %cst_71 = arith.constant dense<0.000000e+00> : vector<2x128xf32>
    %238 = tpu.matmul %236, %220, %cst_71 {dimension_numbers = #tpu.dot_dimension_numbers<[1], [0], [0], [1], [0, 0, 1, 1], [], []>} : vector<2x32xf32>, vector<32x128xf32>, vector<2x128xf32> -> vector<2x128xf32>
    %239 = arith.addf %237, %238 : vector<2x128xf32>
    %240 = arith.negf %239 : vector<2x128xf32>
    %241 = math.exp %240 : vector<2x128xf32>
    %cst_72 = arith.constant 1.000000e+00 : f32
    %242 = vector.broadcast %cst_72 : f32 to vector<2x128xf32>
    %243 = arith.addf %242, %241 : vector<2x128xf32>
    %244 = arith.divf %242, %243 : vector<2x128xf32>
    %245 = vector.extract_strided_slice %244 {offsets = [0, 0], sizes = [2, 32], strides = [1, 1]} : vector<2x128xf32> to vector<2x32xf32>
    %246 = vector.extract_strided_slice %244 {offsets = [0, 32], sizes = [2, 32], strides = [1, 1]} : vector<2x128xf32> to vector<2x32xf32>
    %247 = vector.extract_strided_slice %244 {offsets = [0, 64], sizes = [2, 32], strides = [1, 1]} : vector<2x128xf32> to vector<2x32xf32>
    %cst_73 = arith.constant 2.000000e+00 : f32
    %248 = vector.broadcast %cst_73 : f32 to vector<2x32xf32>
    %249 = arith.mulf %248, %247 : vector<2x32xf32>
    %cst_74 = arith.constant 1.000000e+00 : f32
    %250 = vector.broadcast %cst_74 : f32 to vector<2x32xf32>
    %251 = arith.subf %249, %250 : vector<2x32xf32>
    %252 = vector.extract_strided_slice %244 {offsets = [0, 96], sizes = [2, 32], strides = [1, 1]} : vector<2x128xf32> to vector<2x32xf32>
    %253 = arith.mulf %246, %234 : vector<2x32xf32>
    %254 = arith.mulf %245, %251 : vector<2x32xf32>
    %255 = arith.addf %253, %254 : vector<2x32xf32>
    %256 = math.tanh %255 : vector<2x32xf32>
    %257 = arith.mulf %252, %256 : vector<2x32xf32>
    %c20_75 = arith.constant 20 : index
    %c0_76 = arith.constant 0 : index
    %258 = vector.load %arg4[%c20_75, %c0_76] : memref<32x128xf32, #tpu.memory_space<vmem>>, vector<2x128xf32>
    %cst_77 = arith.constant dense<0.000000e+00> : vector<2x128xf32>
    %259 = tpu.matmul %257, %220, %cst_77 {dimension_numbers = #tpu.dot_dimension_numbers<[1], [0], [0], [1], [0, 0, 1, 1], [], []>} : vector<2x32xf32>, vector<32x128xf32>, vector<2x128xf32> -> vector<2x128xf32>
    %260 = arith.addf %258, %259 : vector<2x128xf32>
    %261 = arith.negf %260 : vector<2x128xf32>
    %262 = math.exp %261 : vector<2x128xf32>
    %cst_78 = arith.constant 1.000000e+00 : f32
    %263 = vector.broadcast %cst_78 : f32 to vector<2x128xf32>
    %264 = arith.addf %263, %262 : vector<2x128xf32>
    %265 = arith.divf %263, %264 : vector<2x128xf32>
    %266 = vector.extract_strided_slice %265 {offsets = [0, 0], sizes = [2, 32], strides = [1, 1]} : vector<2x128xf32> to vector<2x32xf32>
    %267 = vector.extract_strided_slice %265 {offsets = [0, 32], sizes = [2, 32], strides = [1, 1]} : vector<2x128xf32> to vector<2x32xf32>
    %268 = vector.extract_strided_slice %265 {offsets = [0, 64], sizes = [2, 32], strides = [1, 1]} : vector<2x128xf32> to vector<2x32xf32>
    %cst_79 = arith.constant 2.000000e+00 : f32
    %269 = vector.broadcast %cst_79 : f32 to vector<2x32xf32>
    %270 = arith.mulf %269, %268 : vector<2x32xf32>
    %cst_80 = arith.constant 1.000000e+00 : f32
    %271 = vector.broadcast %cst_80 : f32 to vector<2x32xf32>
    %272 = arith.subf %270, %271 : vector<2x32xf32>
    %273 = vector.extract_strided_slice %265 {offsets = [0, 96], sizes = [2, 32], strides = [1, 1]} : vector<2x128xf32> to vector<2x32xf32>
    %274 = arith.mulf %267, %255 : vector<2x32xf32>
    %275 = arith.mulf %266, %272 : vector<2x32xf32>
    %276 = arith.addf %274, %275 : vector<2x32xf32>
    %277 = math.tanh %276 : vector<2x32xf32>
    %278 = arith.mulf %273, %277 : vector<2x32xf32>
    %c22_81 = arith.constant 22 : index
    %c0_82 = arith.constant 0 : index
    %279 = vector.load %arg4[%c22_81, %c0_82] : memref<32x128xf32, #tpu.memory_space<vmem>>, vector<2x128xf32>
    %cst_83 = arith.constant dense<0.000000e+00> : vector<2x128xf32>
    %280 = tpu.matmul %278, %220, %cst_83 {dimension_numbers = #tpu.dot_dimension_numbers<[1], [0], [0], [1], [0, 0, 1, 1], [], []>} : vector<2x32xf32>, vector<32x128xf32>, vector<2x128xf32> -> vector<2x128xf32>
    %281 = arith.addf %279, %280 : vector<2x128xf32>
    %282 = arith.negf %281 : vector<2x128xf32>
    %283 = math.exp %282 : vector<2x128xf32>
    %cst_84 = arith.constant 1.000000e+00 : f32
    %284 = vector.broadcast %cst_84 : f32 to vector<2x128xf32>
    %285 = arith.addf %284, %283 : vector<2x128xf32>
    %286 = arith.divf %284, %285 : vector<2x128xf32>
    %287 = vector.extract_strided_slice %286 {offsets = [0, 0], sizes = [2, 32], strides = [1, 1]} : vector<2x128xf32> to vector<2x32xf32>
    %288 = vector.extract_strided_slice %286 {offsets = [0, 32], sizes = [2, 32], strides = [1, 1]} : vector<2x128xf32> to vector<2x32xf32>
    %289 = vector.extract_strided_slice %286 {offsets = [0, 64], sizes = [2, 32], strides = [1, 1]} : vector<2x128xf32> to vector<2x32xf32>
    %cst_85 = arith.constant 2.000000e+00 : f32
    %290 = vector.broadcast %cst_85 : f32 to vector<2x32xf32>
    %291 = arith.mulf %290, %289 : vector<2x32xf32>
    %cst_86 = arith.constant 1.000000e+00 : f32
    %292 = vector.broadcast %cst_86 : f32 to vector<2x32xf32>
    %293 = arith.subf %291, %292 : vector<2x32xf32>
    %294 = vector.extract_strided_slice %286 {offsets = [0, 96], sizes = [2, 32], strides = [1, 1]} : vector<2x128xf32> to vector<2x32xf32>
    %295 = arith.mulf %288, %276 : vector<2x32xf32>
    %296 = arith.mulf %287, %293 : vector<2x32xf32>
    %297 = arith.addf %295, %296 : vector<2x32xf32>
    %298 = math.tanh %297 : vector<2x32xf32>
    %299 = arith.mulf %294, %298 : vector<2x32xf32>
    %c24_87 = arith.constant 24 : index
    %c0_88 = arith.constant 0 : index
    %300 = vector.load %arg4[%c24_87, %c0_88] : memref<32x128xf32, #tpu.memory_space<vmem>>, vector<2x128xf32>
    %cst_89 = arith.constant dense<0.000000e+00> : vector<2x128xf32>
    %301 = tpu.matmul %299, %220, %cst_89 {dimension_numbers = #tpu.dot_dimension_numbers<[1], [0], [0], [1], [0, 0, 1, 1], [], []>} : vector<2x32xf32>, vector<32x128xf32>, vector<2x128xf32> -> vector<2x128xf32>
    %302 = arith.addf %300, %301 : vector<2x128xf32>
    %303 = arith.negf %302 : vector<2x128xf32>
    %304 = math.exp %303 : vector<2x128xf32>
    %cst_90 = arith.constant 1.000000e+00 : f32
    %305 = vector.broadcast %cst_90 : f32 to vector<2x128xf32>
    %306 = arith.addf %305, %304 : vector<2x128xf32>
    %307 = arith.divf %305, %306 : vector<2x128xf32>
    %308 = vector.extract_strided_slice %307 {offsets = [0, 0], sizes = [2, 32], strides = [1, 1]} : vector<2x128xf32> to vector<2x32xf32>
    %309 = vector.extract_strided_slice %307 {offsets = [0, 32], sizes = [2, 32], strides = [1, 1]} : vector<2x128xf32> to vector<2x32xf32>
    %310 = vector.extract_strided_slice %307 {offsets = [0, 64], sizes = [2, 32], strides = [1, 1]} : vector<2x128xf32> to vector<2x32xf32>
    %cst_91 = arith.constant 2.000000e+00 : f32
    %311 = vector.broadcast %cst_91 : f32 to vector<2x32xf32>
    %312 = arith.mulf %311, %310 : vector<2x32xf32>
    %cst_92 = arith.constant 1.000000e+00 : f32
    %313 = vector.broadcast %cst_92 : f32 to vector<2x32xf32>
    %314 = arith.subf %312, %313 : vector<2x32xf32>
    %315 = vector.extract_strided_slice %307 {offsets = [0, 96], sizes = [2, 32], strides = [1, 1]} : vector<2x128xf32> to vector<2x32xf32>
    %316 = arith.mulf %309, %297 : vector<2x32xf32>
    %317 = arith.mulf %308, %314 : vector<2x32xf32>
    %318 = arith.addf %316, %317 : vector<2x32xf32>
    %319 = math.tanh %318 : vector<2x32xf32>
    %320 = arith.mulf %315, %319 : vector<2x32xf32>
    %c26_93 = arith.constant 26 : index
    %c0_94 = arith.constant 0 : index
    %321 = vector.load %arg4[%c26_93, %c0_94] : memref<32x128xf32, #tpu.memory_space<vmem>>, vector<2x128xf32>
    %cst_95 = arith.constant dense<0.000000e+00> : vector<2x128xf32>
    %322 = tpu.matmul %320, %220, %cst_95 {dimension_numbers = #tpu.dot_dimension_numbers<[1], [0], [0], [1], [0, 0, 1, 1], [], []>} : vector<2x32xf32>, vector<32x128xf32>, vector<2x128xf32> -> vector<2x128xf32>
    %323 = arith.addf %321, %322 : vector<2x128xf32>
    %324 = arith.negf %323 : vector<2x128xf32>
    %325 = math.exp %324 : vector<2x128xf32>
    %cst_96 = arith.constant 1.000000e+00 : f32
    %326 = vector.broadcast %cst_96 : f32 to vector<2x128xf32>
    %327 = arith.addf %326, %325 : vector<2x128xf32>
    %328 = arith.divf %326, %327 : vector<2x128xf32>
    %329 = vector.extract_strided_slice %328 {offsets = [0, 0], sizes = [2, 32], strides = [1, 1]} : vector<2x128xf32> to vector<2x32xf32>
    %330 = vector.extract_strided_slice %328 {offsets = [0, 32], sizes = [2, 32], strides = [1, 1]} : vector<2x128xf32> to vector<2x32xf32>
    %331 = vector.extract_strided_slice %328 {offsets = [0, 64], sizes = [2, 32], strides = [1, 1]} : vector<2x128xf32> to vector<2x32xf32>
    %cst_97 = arith.constant 2.000000e+00 : f32
    %332 = vector.broadcast %cst_97 : f32 to vector<2x32xf32>
    %333 = arith.mulf %332, %331 : vector<2x32xf32>
    %cst_98 = arith.constant 1.000000e+00 : f32
    %334 = vector.broadcast %cst_98 : f32 to vector<2x32xf32>
    %335 = arith.subf %333, %334 : vector<2x32xf32>
    %336 = vector.extract_strided_slice %328 {offsets = [0, 96], sizes = [2, 32], strides = [1, 1]} : vector<2x128xf32> to vector<2x32xf32>
    %337 = arith.mulf %330, %318 : vector<2x32xf32>
    %338 = arith.mulf %329, %335 : vector<2x32xf32>
    %339 = arith.addf %337, %338 : vector<2x32xf32>
    %340 = math.tanh %339 : vector<2x32xf32>
    %341 = arith.mulf %336, %340 : vector<2x32xf32>
    %c28_99 = arith.constant 28 : index
    %c0_100 = arith.constant 0 : index
    %342 = vector.load %arg4[%c28_99, %c0_100] : memref<32x128xf32, #tpu.memory_space<vmem>>, vector<2x128xf32>
    %cst_101 = arith.constant dense<0.000000e+00> : vector<2x128xf32>
    %343 = tpu.matmul %341, %220, %cst_101 {dimension_numbers = #tpu.dot_dimension_numbers<[1], [0], [0], [1], [0, 0, 1, 1], [], []>} : vector<2x32xf32>, vector<32x128xf32>, vector<2x128xf32> -> vector<2x128xf32>
    %344 = arith.addf %342, %343 : vector<2x128xf32>
    %345 = arith.negf %344 : vector<2x128xf32>
    %346 = math.exp %345 : vector<2x128xf32>
    %cst_102 = arith.constant 1.000000e+00 : f32
    %347 = vector.broadcast %cst_102 : f32 to vector<2x128xf32>
    %348 = arith.addf %347, %346 : vector<2x128xf32>
    %349 = arith.divf %347, %348 : vector<2x128xf32>
    %350 = vector.extract_strided_slice %349 {offsets = [0, 0], sizes = [2, 32], strides = [1, 1]} : vector<2x128xf32> to vector<2x32xf32>
    %351 = vector.extract_strided_slice %349 {offsets = [0, 32], sizes = [2, 32], strides = [1, 1]} : vector<2x128xf32> to vector<2x32xf32>
    %352 = vector.extract_strided_slice %349 {offsets = [0, 64], sizes = [2, 32], strides = [1, 1]} : vector<2x128xf32> to vector<2x32xf32>
    %cst_103 = arith.constant 2.000000e+00 : f32
    %353 = vector.broadcast %cst_103 : f32 to vector<2x32xf32>
    %354 = arith.mulf %353, %352 : vector<2x32xf32>
    %cst_104 = arith.constant 1.000000e+00 : f32
    %355 = vector.broadcast %cst_104 : f32 to vector<2x32xf32>
    %356 = arith.subf %354, %355 : vector<2x32xf32>
    %357 = vector.extract_strided_slice %349 {offsets = [0, 96], sizes = [2, 32], strides = [1, 1]} : vector<2x128xf32> to vector<2x32xf32>
    %358 = arith.mulf %351, %339 : vector<2x32xf32>
    %359 = arith.mulf %350, %356 : vector<2x32xf32>
    %360 = arith.addf %358, %359 : vector<2x32xf32>
    %361 = math.tanh %360 : vector<2x32xf32>
    %362 = arith.mulf %357, %361 : vector<2x32xf32>
    %c30_105 = arith.constant 30 : index
    %c0_106 = arith.constant 0 : index
    %363 = vector.load %arg4[%c30_105, %c0_106] : memref<32x128xf32, #tpu.memory_space<vmem>>, vector<2x128xf32>
    %cst_107 = arith.constant dense<0.000000e+00> : vector<2x128xf32>
    %364 = tpu.matmul %362, %220, %cst_107 {dimension_numbers = #tpu.dot_dimension_numbers<[1], [0], [0], [1], [0, 0, 1, 1], [], []>} : vector<2x32xf32>, vector<32x128xf32>, vector<2x128xf32> -> vector<2x128xf32>
    %365 = arith.addf %363, %364 : vector<2x128xf32>
    %366 = arith.negf %365 : vector<2x128xf32>
    %367 = math.exp %366 : vector<2x128xf32>
    %cst_108 = arith.constant 1.000000e+00 : f32
    %368 = vector.broadcast %cst_108 : f32 to vector<2x128xf32>
    %369 = arith.addf %368, %367 : vector<2x128xf32>
    %370 = arith.divf %368, %369 : vector<2x128xf32>
    %371 = vector.extract_strided_slice %370 {offsets = [0, 0], sizes = [2, 32], strides = [1, 1]} : vector<2x128xf32> to vector<2x32xf32>
    %372 = vector.extract_strided_slice %370 {offsets = [0, 32], sizes = [2, 32], strides = [1, 1]} : vector<2x128xf32> to vector<2x32xf32>
    %373 = vector.extract_strided_slice %370 {offsets = [0, 64], sizes = [2, 32], strides = [1, 1]} : vector<2x128xf32> to vector<2x32xf32>
    %cst_109 = arith.constant 2.000000e+00 : f32
    %374 = vector.broadcast %cst_109 : f32 to vector<2x32xf32>
    %375 = arith.mulf %374, %373 : vector<2x32xf32>
    %cst_110 = arith.constant 1.000000e+00 : f32
    %376 = vector.broadcast %cst_110 : f32 to vector<2x32xf32>
    %377 = arith.subf %375, %376 : vector<2x32xf32>
    %378 = vector.extract_strided_slice %370 {offsets = [0, 96], sizes = [2, 32], strides = [1, 1]} : vector<2x128xf32> to vector<2x32xf32>
    %379 = arith.mulf %372, %360 : vector<2x32xf32>
    %380 = arith.mulf %371, %377 : vector<2x32xf32>
    %381 = arith.addf %379, %380 : vector<2x32xf32>
    %382 = math.tanh %381 : vector<2x32xf32>
    %383 = arith.mulf %378, %382 : vector<2x32xf32>
    %cst_111 = arith.constant dense<0xFF800000> : vector<2xf32>
    %384 = vector.multi_reduction <maximumf>, %383, %cst_111 [1] : vector<2x32xf32> to vector<2xf32>
    %385 = vector.shape_cast %384 : vector<2xf32> to vector<2x1xf32>
    %386 = vector.broadcast %385 : vector<2x1xf32> to vector<2x32xf32>
    %387 = arith.subf %383, %386 : vector<2x32xf32>
    %388 = math.exp %387 : vector<2x32xf32>
    %cst_112 = arith.constant dense<0.000000e+00> : vector<2xf32>
    %389 = vector.multi_reduction <add>, %388, %cst_112 [1] : vector<2x32xf32> to vector<2xf32>
    %390 = vector.shape_cast %389 : vector<2xf32> to vector<2x1xf32>
    %391 = tpu.reciprocal %390 {approx = true} : vector<2x1xf32> -> vector<2x1xf32>
    %392 = vector.broadcast %391 : vector<2x1xf32> to vector<2x32xf32>
    %393 = arith.mulf %388, %392 : vector<2x32xf32>
    %cst_113 = arith.constant dense<0.000000e+00> : vector<2x128xf32>
    %394 = tpu.matmul %393, %1, %cst_113 {dimension_numbers = #tpu.dot_dimension_numbers<[1], [0], [0], [1], [0, 0, 1, 1], [], []>} : vector<2x32xf32>, vector<32x128xf32>, vector<2x128xf32> -> vector<2x128xf32>
    %395 = vector.broadcast %2 : vector<1x128xf32> to vector<2x128xf32>
    %396 = arith.addf %394, %395 : vector<2x128xf32>
    %c2_114 = arith.constant 2 : index
    %c0_115 = arith.constant 0 : index
    %397 = vector.load %arg3[%c2_114, %c0_115] : memref<4x128xf32, #tpu.memory_space<vmem>>, vector<2x128xf32>
    tpu.vector_store %arg3[%c2_114, %c0_115], %396 {strides = array<i32>} : memref<4x128xf32, #tpu.memory_space<vmem>>, vector<2x128xf32>,
    return
  }
}

</mosaic_0001>

<llo_original>
// kernel: _fused_forward.1
$region0: #{_fused_forward.1}
  #allocation0 [shape = 'u32[]', space=smem, size = 0x4, offset = 0x4, fixed_abs, tag = 'smem constant byte address 0x4 - core index']
  #allocation1 [shape = 'u32[144,128]{1,0:T(1,128)}', space=vmem, size = 0x12000, scoped, tag = 'internal scratch']
  #allocation2 [shape = 'f32[32,128]{1,0:T(8,128)}', space=vmem, size = 0x4000, scoped, tag = 'scratch operand']
  %s0 = inlined_call_operand.vmem [shape: f32[16,16], index: 0, kind: input, shape index: {}]
  %s1 = inlined_call_operand.hbm [shape: f32[144,128], index: 1, kind: input, shape index: {}]
  %s2 = inlined_call_operand.vmem [shape: f32[3,128], index: 2, kind: input, shape index: {}]
  %s3 = inlined_call_operand.hbm [shape: f32[4,128], index: 3, kind: output, shape index: {}]
  %s4 = sld [smem:[#allocation0]]
  $region26: #{_fused_forward.1} parent=0
    _
  %s6 = ssub.s32 1, %s4
  %s7 = scalar_select 0, %s6, %s4
  $region1: #{_fused_forward.1} parent=0
    #allocation3 [shape = 'u8[73728]{0}', space=vmem, size = 0x12000, scoped, tag = 'input window, operand 1, single buffered']
    #allocation4 [shape = 's32[1]{0}', space=sflag, size = 0x4, scoped, tag = 'scoped memory for _fused_forward.1']
    #allocation5 [shape = 's32[1]{0}', space=sflag, size = 0x4, scoped, tag = 'scoped memory for _fused_forward.1']
    #allocation6 [shape = 'u8[2048]{0}', space=vmem, size = 0x800, scoped, tag = 'output window, operand 0, single buffered']
    %8 = vsyncpa [#allocation4], 0
    %9 = vsyncpa [#allocation5], 0
    // Predicated region
    $region2: #{_fused_forward.1} parent=1 // pred_check
      _
    $region3: #{_fused_forward.1} parent=1 // pred_check_branch
      %11 = sbr.rel (0) target = $region5
    $region4: #{_fused_forward.1} parent=1 // pred_region
      _
    $region5: #{_fused_forward.1} parent=1 // pred_fallthru
      _
    // Predicated region
    $region6: #{_fused_forward.1} parent=1 // pred_check
      _
    $region7: #{_fused_forward.1} parent=1 // pred_check_branch
      %13 = sbr.rel (0) target = $region9
    $region8: #{_fused_forward.1} parent=1 // pred_region
      %s15 = ssub.s32 2304, 2304
      %16 = vsyncadd [#allocation4], %s15
      %s17 = sshll.u32 [#allocation3], 4
      %s18 = int_to_ptr.vmem [resolvable:$true] %s17
      %23 = dma.hbm_to_vmem [thread:$0]  %s1, 2304, %s18, [#allocation4], 128, 128, 8
    $region9: #{_fused_forward.1} parent=1 // pred_fallthru
      _
    // Predicated region
    $region10: #{_fused_forward.1} parent=1 // pred_check
      _
    $region11: #{_fused_forward.1} parent=1 // pred_check_branch
      %25 = sbr.rel (0) target = $region13
    $region12: #{_fused_forward.1} parent=1 // pred_region
      _
    $region13: #{_fused_forward.1} parent=1 // pred_fallthru
      _
    // Predicated region
    $region14: #{_fused_forward.1} parent=1 // pred_check
      _
    $region15: #{_fused_forward.1} parent=1 // pred_check_branch
      %27 = sbr.rel (0) target = $region17
    $region16: #{_fused_forward.1} parent=1 // pred_region
      %28 = dma.done [#allocation4], 2304
    $region17: #{_fused_forward.1} parent=1 // pred_fallthru
      _
    %v29 = vld [vmem:[%s0] sm:$0xff]
    %v30 = vld [vmem:[%s0 + $0x8] sm:$0xff]
    %v31 = vld [vmem:[#allocation3 + $0x70] sm:$0xff]
    %v32 = vld [vmem:[#allocation3 + $0x78] sm:$0xff]
    %v33 = vld [vmem:[#allocation3 + $0x80] sm:$0xff]
    %v34 = vld [vmem:[#allocation3 + $0x88] sm:$0xff]
    %v35 = vld [vmem:[%s2 + $0x2] sm:$0x1]
    %v36 = vld [vmem:[#allocation3 + $0x10] sm:$0xff]
    %v37 = vld [vmem:[#allocation3 + $0x18] sm:$0xff]
    %v38 = vld [vmem:[#allocation3 + $0x20] sm:$0xff]
    %v39 = vld [vmem:[#allocation3 + $0x28] sm:$0xff]
    %v40 = vld [vmem:[#allocation3] sm:$0xff]
    %v41 = vld [vmem:[#allocation3 + $0x8] sm:$0xff]
    %v42 = vld [vmem:[%s2] sm:$0x1]
    %v43 = vlaneseq
    %v44 = vshrl.u32 %v43, 7
    %v45 = vsub.s32 0, %v44
    %v46 = vrot.slane %v42, %v45
    %vm47 = vcmask 130048
    %v49 = vsel %vm47, %v29, 0
    %v52 = vsel %vm47, %v30, 0
    %54 = vmatprep.subr.mxu0 0.0
    %55 = vmatpush1.msra.mxu0 %v40
    %56 = vmatprep.subr.mxu0 0.0
    %57 = vmatpush1.msra.mxu0 %v41
    %58 = vmatprep.subr.mxu0 0.0
    %59 = vmatpush1.msra.mxu0 0.0
    %60 = vmatprep.subr.mxu0 0.0
    %61 = vmatpush1.msra.mxu0 0.0
    %62 = vmatprep.subr.mxu0 0.0
    %63 = vmatpush1.msra.mxu0 0.0
    %64 = vmatprep.subr.mxu0 0.0
    %65 = vmatpush1.msra.mxu0 0.0
    %66 = vmatprep.subr.mxu0 0.0
    %67 = vmatpush1.msra.mxu0 0.0
    %68 = vmatprep.subr.mxu0 0.0
    %69 = vmatpush1.msra.mxu0 0.0
    %70 = vmatprep.subr.mxu0 0.0
    %71 = vmatpush1.msra.mxu0 0.0
    %72 = vmatprep.subr.mxu0 0.0
    %73 = vmatpush1.msra.mxu0 0.0
    %74 = vmatprep.subr.mxu0 0.0
    %75 = vmatpush1.msra.mxu0 0.0
    %76 = vmatprep.subr.mxu0 0.0
    %77 = vmatpush1.msra.mxu0 0.0
    %78 = vmatprep.subr.mxu0 0.0
    %79 = vmatpush1.msra.mxu0 0.0
    %80 = vmatprep.subr.mxu0 0.0
    %81 = vmatpush1.msra.mxu0 0.0
    %82 = vmatprep.subr.mxu0 0.0
    %83 = vmatpush1.msra.mxu0 0.0
    %84 = vmatprep.subr.mxu0 0.0
    %85 = vmatpush1.msra.mxu0 0.0
    %86 = vmatprep.subr.mxu0 0.0
    %87 = vmatpush1.msra.mxu0 0.0
    %88 = vmatprep.subr.mxu0 0.0
    %89 = vmatpush1.msra.mxu0 0.0
    %90 = vmatprep.subr.mxu0 0.0
    %91 = vmatpush1.msra.mxu0 0.0
    %92 = vmatprep.subr.mxu0 0.0
    %93 = vmatpush1.msra.mxu0 0.0
    %94 = vmatprep.subr.mxu0 0.0
    %95 = vmatpush1.msra.mxu0 0.0
    %96 = vmatprep.subr.mxu0 0.0
    %97 = vmatpush1.msra.mxu0 0.0
    %98 = vmatprep.subr.mxu0 0.0
    %99 = vmatpush1.msra.mxu0 0.0
    %100 = vmatprep.subr.mxu0 0.0
    %101 = vmatpush1.msra.mxu0 0.0
    %102 = vmatprep.subr.mxu0 0.0
    %103 = vmatpush1.msra.mxu0 0.0
    %104 = vmatprep.subr.mxu0 0.0
    %105 = vmatpush1.msra.mxu0 0.0
    %106 = vmatprep.subr.mxu0 0.0
    %107 = vmatpush1.msra.mxu0 0.0
    %108 = vmatprep.subr.mxu0 0.0
    %109 = vmatpush1.msra.mxu0 0.0
    %110 = vmatprep.subr.mxu0 0.0
    %111 = vmatpush1.msra.mxu0 0.0
    %112 = vmatprep.subr.mxu0 0.0
    %113 = vmatpush1.msra.mxu0 0.0
    %114 = vmatprep.subr.mxu0 0.0
    %115 = vmatpush1.msra.mxu0 0.0
    %116 = vmatprep.subr.mxu0 0.0
    %117 = vmatpush1.msra.mxu0 0.0
    %118 = vmatprep.mubr.f32.mxu0 0.0
    %119 = vmatmul.mubr.f32.gmra.mrb[0].mxu0 %v49
    %v120 = vpop.f32.mrb[0].mxu0
    %v121 = vadd.f32 %v46, %v120
    %v122 = vpop.f32.mrb[0].mxu0
    %123 = vmatprep.mubr.f32.mxu0 0.0
    %124 = vmatmul.mubr.f32.gmra.mrb[0].mxu0 %v52
    %v125 = vpop.f32.mrb[0].mxu0
    %v126 = vadd.f32 %v46, %v125
    %v127 = vpop.f32.mrb[0].mxu0
    %128 = vdwg.mxu0
    %v129 = vld [vmem:[#allocation3 + $0x30] sm:$0xff]
    %v130 = vld [vmem:[#allocation3 + $0x38] sm:$0xff]
    %v131 = vld [vmem:[#allocation3 + $0x40] sm:$0xff]
    %v132 = vld [vmem:[#allocation3 + $0x48] sm:$0xff]
    %v133 = vld [vmem:[%s2 + $0x1] sm:$0x1]
    %v134 = vxor.u32 %v121, 2147483648
    %v135 = vmul.f32 %v134, 1.442695
    %v136 = vpow.pop %v135
    %v137 = vadd.f32 %v136, 1.0
    %v138 = vrcp.pop %v137
    %v139 = vmul.f32 1.0, %v138
    %v140 = vmul.f32 %v139, 2.0
    %v141 = vsub.f32 %v140, 1.0
    %143 = vrot.lane.b32.xlu0 %v141, 64
    %v144 = vpop.permute.xlu0 %143
    %v146 = vmul.f32 %v139, %v144
    %v147 = vtanh.pop %v146
    %149 = vrot.lane.b32.xlu0 %v147, 96
    %v150 = vpop.permute.xlu0 %149
    %v152 = vmul.f32 %v139, %v150
    %v153 = vlaneseq
    %v154 = vshrl.u32 %v153, 7
    %v155 = vsub.s32 0, %v154
    %v156 = vrot.slane %v133, %v155
    %158 = vrot.lane.b32.xlu0 %v152, 32
    %v159 = vpop.permute.xlu0 %158
    %vm160 = vcmask 261120
    %v161 = vsel %vm160, %v159, 0
    %163 = vmatprep.subr.mxu0 0.0
    %164 = vmatpush1.msra.mxu0 %v129
    %165 = vmatprep.subr.mxu0 0.0
    %166 = vmatpush1.msra.mxu0 %v130
    %167 = vmatprep.subr.mxu0 0.0
    %168 = vmatpush1.msra.mxu0 %v131
    %169 = vmatprep.subr.mxu0 0.0
    %170 = vmatpush1.msra.mxu0 %v132
    %171 = vmatprep.subr.mxu0 0.0
    %172 = vmatpush1.msra.mxu0 0.0
    %173 = vmatprep.subr.mxu0 0.0
    %174 = vmatpush1.msra.mxu0 0.0
    %175 = vmatprep.subr.mxu0 0.0
    %176 = vmatpush1.msra.mxu0 0.0
    %177 = vmatprep.subr.mxu0 0.0
    %178 = vmatpush1.msra.mxu0 0.0
    %179 = vmatprep.subr.mxu0 0.0
    %180 = vmatpush1.msra.mxu0 0.0
    %181 = vmatprep.subr.mxu0 0.0
    %182 = vmatpush1.msra.mxu0 0.0
    %183 = vmatprep.subr.mxu0 0.0
    %184 = vmatpush1.msra.mxu0 0.0
    %185 = vmatprep.subr.mxu0 0.0
    %186 = vmatpush1.msra.mxu0 0.0
    %187 = vmatprep.subr.mxu0 0.0
    %188 = vmatpush1.msra.mxu0 0.0
    %189 = vmatprep.subr.mxu0 0.0
    %190 = vmatpush1.msra.mxu0 0.0
    %191 = vmatprep.subr.mxu0 0.0
    %192 = vmatpush1.msra.mxu0 0.0
    %193 = vmatprep.subr.mxu0 0.0
    %194 = vmatpush1.msra.mxu0 0.0
    %195 = vmatprep.subr.mxu0 0.0
    %196 = vmatpush1.msra.mxu0 0.0
    %197 = vmatprep.subr.mxu0 0.0
    %198 = vmatpush1.msra.mxu0 0.0
    %199 = vmatprep.subr.mxu0 0.0
    %200 = vmatpush1.msra.mxu0 0.0
    %201 = vmatprep.subr.mxu0 0.0
    %202 = vmatpush1.msra.mxu0 0.0
    %203 = vmatprep.subr.mxu0 0.0
    %204 = vmatpush1.msra.mxu0 0.0
    %205 = vmatprep.subr.mxu0 0.0
    %206 = vmatpush1.msra.mxu0 0.0
    %207 = vmatprep.subr.mxu0 0.0
    %208 = vmatpush1.msra.mxu0 0.0
    %209 = vmatprep.subr.mxu0 0.0
    %210 = vmatpush1.msra.mxu0 0.0
    %211 = vmatprep.subr.mxu0 0.0
    %212 = vmatpush1.msra.mxu0 0.0
    %213 = vmatprep.subr.mxu0 0.0
    %214 = vmatpush1.msra.mxu0 0.0
    %215 = vmatprep.subr.mxu0 0.0
    %216 = vmatpush1.msra.mxu0 0.0
    %217 = vmatprep.subr.mxu0 0.0
    %218 = vmatpush1.msra.mxu0 0.0
    %219 = vmatprep.subr.mxu0 0.0
    %220 = vmatpush1.msra.mxu0 0.0
    %221 = vmatprep.subr.mxu0 0.0
    %222 = vmatpush1.msra.mxu0 0.0
    %223 = vmatprep.subr.mxu0 0.0
    %224 = vmatpush1.msra.mxu0 0.0
    %225 = vmatprep.subr.mxu0 0.0
    %226 = vmatpush1.msra.mxu0 0.0
    %227 = vmatprep.mubr.f32.mxu0 0.0
    %228 = vmatmul.mubr.f32.gmra.mrb[0].mxu0 %v161
    %v229 = vpop.f32.mrb[0].mxu0
    %v230 = vadd.f32 %v156, %v229
    %v231 = vpop.f32.mrb[0].mxu0
    %232 = vdwg.mxu0
    %233 = vst [vmem:[#allocation2 + $0x10] sm:$0x3] %v230
    %234 = vmatprep.subr.mxu0 0.0
    %235 = vmatpush1.msra.mxu0 %v36
    %236 = vmatprep.subr.mxu0 0.0
    %237 = vmatpush1.msra.mxu0 %v37
    %238 = vmatprep.subr.mxu0 0.0
    %239 = vmatpush1.msra.mxu0 %v38
    %240 = vmatprep.subr.mxu0 0.0
    %241 = vmatpush1.msra.mxu0 %v39
    %242 = vmatprep.subr.mxu0 0.0
    %243 = vmatpush1.msra.mxu0 0.0
    %244 = vmatprep.subr.mxu0 0.0
    %245 = vmatpush1.msra.mxu0 0.0
    %246 = vmatprep.subr.mxu0 0.0
    %247 = vmatpush1.msra.mxu0 0.0
    %248 = vmatprep.subr.mxu0 0.0
    %249 = vmatpush1.msra.mxu0 0.0
    %250 = vmatprep.subr.mxu0 0.0
    %251 = vmatpush1.msra.mxu0 0.0
    %252 = vmatprep.subr.mxu0 0.0
    %253 = vmatpush1.msra.mxu0 0.0
    %254 = vmatprep.subr.mxu0 0.0
    %255 = vmatpush1.msra.mxu0 0.0
    %256 = vmatprep.subr.mxu0 0.0
    %257 = vmatpush1.msra.mxu0 0.0
    %258 = vmatprep.subr.mxu0 0.0
    %259 = vmatpush1.msra.mxu0 0.0
    %260 = vmatprep.subr.mxu0 0.0
    %261 = vmatpush1.msra.mxu0 0.0
    %262 = vmatprep.subr.mxu0 0.0
    %263 = vmatpush1.msra.mxu0 0.0
    %264 = vmatprep.subr.mxu0 0.0
    %265 = vmatpush1.msra.mxu0 0.0
    %266 = vmatprep.subr.mxu0 0.0
    %267 = vmatpush1.msra.mxu0 0.0
    %268 = vmatprep.subr.mxu0 0.0
    %269 = vmatpush1.msra.mxu0 0.0
    %270 = vmatprep.subr.mxu0 0.0
    %271 = vmatpush1.msra.mxu0 0.0
    %272 = vmatprep.subr.mxu0 0.0
    %273 = vmatpush1.msra.mxu0 0.0
    %274 = vmatprep.subr.mxu0 0.0
    %275 = vmatpush1.msra.mxu0 0.0
    %276 = vmatprep.subr.mxu0 0.0
    %277 = vmatpush1.msra.mxu0 0.0
    %278 = vmatprep.subr.mxu0 0.0
    %279 = vmatpush1.msra.mxu0 0.0
    %280 = vmatprep.subr.mxu0 0.0
    %281 = vmatpush1.msra.mxu0 0.0
    %282 = vmatprep.subr.mxu0 0.0
    %283 = vmatpush1.msra.mxu0 0.0
    %284 = vmatprep.subr.mxu0 0.0
    %285 = vmatpush1.msra.mxu0 0.0
    %286 = vmatprep.subr.mxu0 0.0
    %287 = vmatpush1.msra.mxu0 0.0
    %288 = vmatprep.subr.mxu0 0.0
    %289 = vmatpush1.msra.mxu0 0.0
    %290 = vmatprep.subr.mxu0 0.0
    %291 = vmatpush1.msra.mxu0 0.0
    %292 = vmatprep.subr.mxu0 0.0
    %293 = vmatpush1.msra.mxu0 0.0
    %294 = vmatprep.subr.mxu0 0.0
    %295 = vmatpush1.msra.mxu0 0.0
    %296 = vmatprep.subr.mxu0 0.0
    %297 = vmatpush1.msra.mxu0 0.0
    %298 = vmatprep.mubr.f32.mxu0 0.0
    %299 = vmatmul.mubr.f32.gmra.mrb[0].mxu0 %v161
    %v300 = vpop.f32.mrb[0].mxu0
    %v301 = vadd.f32 0.0, %v300
    %v302 = vpop.f32.mrb[0].mxu0
    %303 = vdwg.mxu0
    %v305 = vrot.slane %v301, 6
    %v307 = vadd.f32 %v121, %v305
    %v308 = vxor.u32 %v307, 2147483648
    %v309 = vmul.f32 %v308, 1.442695
    %v310 = vpow.pop %v309
    %v311 = vadd.f32 %v310, 1.0
    %v312 = vrcp.pop %v311
    %v313 = vmul.f32 1.0, %v312
    %v314 = vmul.f32 %v313, 2.0
    %v315 = vsub.f32 %v314, 1.0
    %v317 = vrot.slane %v146, 6
    %318 = vrot.lane.b32.xlu0 %v317, 32
    %v319 = vpop.permute.xlu0 %318
    %v321 = vmul.f32 %v313, %v319
    %323 = vrot.lane.b32.xlu0 %v315, 64
    %v324 = vpop.permute.xlu0 %323
    %v326 = vmul.f32 %v313, %v324
    %328 = vrot.lane.b32.xlu0 %v326, 32
    %v329 = vpop.permute.xlu0 %328
    %v331 = vadd.f32 %v321, %v329
    %v332 = vtanh.pop %v331
    %334 = vrot.lane.b32.xlu0 %v332, 64
    %v335 = vpop.permute.xlu0 %334
    %v337 = vmul.f32 %v313, %v335
    %v339 = vrot.slane %v337, 2
    %340 = vrot.lane.b32.xlu0 %v339, 32
    %v341 = vpop.permute.xlu0 %340
    %v342 = vsel %vm160, %v341, 0
    %344 = vmatprep.subr.mxu0 0.0
    %345 = vmatpush1.msra.mxu0 %v129
    %346 = vmatprep.subr.mxu0 0.0
    %347 = vmatpush1.msra.mxu0 %v130
    %348 = vmatprep.subr.mxu0 0.0
    %349 = vmatpush1.msra.mxu0 %v131
    %350 = vmatprep.subr.mxu0 0.0
    %351 = vmatpush1.msra.mxu0 %v132
    %352 = vmatprep.subr.mxu0 0.0
    %353 = vmatpush1.msra.mxu0 0.0
    %354 = vmatprep.subr.mxu0 0.0
    %355 = vmatpush1.msra.mxu0 0.0
    %356 = vmatprep.subr.mxu0 0.0
    %357 = vmatpush1.msra.mxu0 0.0
    %358 = vmatprep.subr.mxu0 0.0
    %359 = vmatpush1.msra.mxu0 0.0
    %360 = vmatprep.subr.mxu0 0.0
    %361 = vmatpush1.msra.mxu0 0.0
    %362 = vmatprep.subr.mxu0 0.0
    %363 = vmatpush1.msra.mxu0 0.0
    %364 = vmatprep.subr.mxu0 0.0
    %365 = vmatpush1.msra.mxu0 0.0
    %366 = vmatprep.subr.mxu0 0.0
    %367 = vmatpush1.msra.mxu0 0.0
    %368 = vmatprep.subr.mxu0 0.0
    %369 = vmatpush1.msra.mxu0 0.0
    %370 = vmatprep.subr.mxu0 0.0
    %371 = vmatpush1.msra.mxu0 0.0
    %372 = vmatprep.subr.mxu0 0.0
    %373 = vmatpush1.msra.mxu0 0.0
    %374 = vmatprep.subr.mxu0 0.0
    %375 = vmatpush1.msra.mxu0 0.0
    %376 = vmatprep.subr.mxu0 0.0
    %377 = vmatpush1.msra.mxu0 0.0
    %378 = vmatprep.subr.mxu0 0.0
    %379 = vmatpush1.msra.mxu0 0.0
    %380 = vmatprep.subr.mxu0 0.0
    %381 = vmatpush1.msra.mxu0 0.0
    %382 = vmatprep.subr.mxu0 0.0
    %383 = vmatpush1.msra.mxu0 0.0
    %384 = vmatprep.subr.mxu0 0.0
    %385 = vmatpush1.msra.mxu0 0.0
    %386 = vmatprep.subr.mxu0 0.0
    %387 = vmatpush1.msra.mxu0 0.0
    %388 = vmatprep.subr.mxu0 0.0
    %389 = vmatpush1.msra.mxu0 0.0
    %390 = vmatprep.subr.mxu0 0.0
    %391 = vmatpush1.msra.mxu0 0.0
    %392 = vmatprep.subr.mxu0 0.0
    %393 = vmatpush1.msra.mxu0 0.0
    %394 = vmatprep.subr.mxu0 0.0
    %395 = vmatpush1.msra.mxu0 0.0
    %396 = vmatprep.subr.mxu0 0.0
    %397 = vmatpush1.msra.mxu0 0.0
    %398 = vmatprep.subr.mxu0 0.0
    %399 = vmatpush1.msra.mxu0 0.0
    %400 = vmatprep.subr.mxu0 0.0
    %401 = vmatpush1.msra.mxu0 0.0
    %402 = vmatprep.subr.mxu0 0.0
    %403 = vmatpush1.msra.mxu0 0.0
    %404 = vmatprep.subr.mxu0 0.0
    %405 = vmatpush1.msra.mxu0 0.0
    %406 = vmatprep.subr.mxu0 0.0
    %407 = vmatpush1.msra.mxu0 0.0
    %408 = vmatprep.mubr.f32.mxu0 0.0
    %409 = vmatmul.mubr.f32.gmra.mrb[0].mxu0 %v342
    %v410 = vpop.f32.mrb[0].mxu0
    %v411 = vadd.f32 %v156, %v410
    %v412 = vpop.f32.mrb[0].mxu0
    %413 = vdwg.mxu0
    %414 = vst [vmem:[#allocation2 + $0x12] sm:$0x3] %v411
    %415 = vmatprep.subr.mxu0 0.0
    %416 = vmatpush1.msra.mxu0 %v36
    %417 = vmatprep.subr.mxu0 0.0
    %418 = vmatpush1.msra.mxu0 %v37
    %419 = vmatprep.subr.mxu0 0.0
    %420 = vmatpush1.msra.mxu0 %v38
    %421 = vmatprep.subr.mxu0 0.0
    %422 = vmatpush1.msra.mxu0 %v39
    %423 = vmatprep.subr.mxu0 0.0
    %424 = vmatpush1.msra.mxu0 0.0
    %425 = vmatprep.subr.mxu0 0.0
    %426 = vmatpush1.msra.mxu0 0.0
    %427 = vmatprep.subr.mxu0 0.0
    %428 = vmatpush1.msra.mxu0 0.0
    %429 = vmatprep.subr.mxu0 0.0
    %430 = vmatpush1.msra.mxu0 0.0
    %431 = vmatprep.subr.mxu0 0.0
    %432 = vmatpush1.msra.mxu0 0.0
    %433 = vmatprep.subr.mxu0 0.0
    %434 = vmatpush1.msra.mxu0 0.0
    %435 = vmatprep.subr.mxu0 0.0
    %436 = vmatpush1.msra.mxu0 0.0
    %437 = vmatprep.subr.mxu0 0.0
    %438 = vmatpush1.msra.mxu0 0.0
    %439 = vmatprep.subr.mxu0 0.0
    %440 = vmatpush1.msra.mxu0 0.0
    %441 = vmatprep.subr.mxu0 0.0
    %442 = vmatpush1.msra.mxu0 0.0
    %443 = vmatprep.subr.mxu0 0.0
    %444 = vmatpush1.msra.mxu0 0.0
    %445 = vmatprep.subr.mxu0 0.0
    %446 = vmatpush1.msra.mxu0 0.0
    %447 = vmatprep.subr.mxu0 0.0
    %448 = vmatpush1.msra.mxu0 0.0
    %449 = vmatprep.subr.mxu0 0.0
    %450 = vmatpush1.msra.mxu0 0.0
    %451 = vmatprep.subr.mxu0 0.0
    %452 = vmatpush1.msra.mxu0 0.0
    %453 = vmatprep.subr.mxu0 0.0
    %454 = vmatpush1.msra.mxu0 0.0
    %455 = vmatprep.subr.mxu0 0.0
    %456 = vmatpush1.msra.mxu0 0.0
    %457 = vmatprep.subr.mxu0 0.0
    %458 = vmatpush1.msra.mxu0 0.0
    %459 = vmatprep.subr.mxu0 0.0
    %460 = vmatpush1.msra.mxu0 0.0
    %461 = vmatprep.subr.mxu0 0.0
    %462 = vmatpush1.msra.mxu0 0.0
    %463 = vmatprep.subr.mxu0 0.0
    %464 = vmatpush1.msra.mxu0 0.0
    %465 = vmatprep.subr.mxu0 0.0
    %466 = vmatpush1.msra.mxu0 0.0
    %467 = vmatprep.subr.mxu0 0.0
    %468 = vmatpush1.msra.mxu0 0.0
    %469 = vmatprep.subr.mxu0 0.0
    %470 = vmatpush1.msra.mxu0 0.0
    %471 = vmatprep.subr.mxu0 0.0
    %472 = vmatpush1.msra.mxu0 0.0
    %473 = vmatprep.subr.mxu0 0.0
    %474 = vmatpush1.msra.mxu0 0.0
    %475 = vmatprep.subr.mxu0 0.0
    %476 = vmatpush1.msra.mxu0 0.0
    %477 = vmatprep.subr.mxu0 0.0
    %478 = vmatpush1.msra.mxu0 0.0
    %479 = vmatprep.mubr.f32.mxu0 0.0
    %480 = vmatmul.mubr.f32.gmra.mrb[0].mxu0 %v342
    %v481 = vpop.f32.mrb[0].mxu0
    %v482 = vadd.f32 0.0, %v481
    %v483 = vpop.f32.mrb[0].mxu0
    %484 = vdwg.mxu0
    %v486 = vrot.slane %v482, 4
    %v488 = vadd.f32 %v121, %v486
    %v489 = vxor.u32 %v488, 2147483648
    %v490 = vmul.f32 %v489, 1.442695
    %v491 = vpow.pop %v490
    %v492 = vadd.f32 %v491, 1.0
    %v493 = vrcp.pop %v492
    %v494 = vmul.f32 1.0, %v493
    %v495 = vmul.f32 %v494, 2.0
    %v496 = vsub.f32 %v495, 1.0
    %v498 = vrot.slane %v331, 6
    %v500 = vmul.f32 %v494, %v498
    %502 = vrot.lane.b32.xlu0 %v496, 64
    %v503 = vpop.permute.xlu0 %502
    %v505 = vmul.f32 %v494, %v503
    %507 = vrot.lane.b32.xlu0 %v505, 32
    %v508 = vpop.permute.xlu0 %507
    %v510 = vadd.f32 %v500, %v508
    %v511 = vtanh.pop %v510
    %513 = vrot.lane.b32.xlu0 %v511, 64
    %v514 = vpop.permute.xlu0 %513
    %v516 = vmul.f32 %v494, %v514
    %v518 = vrot.slane %v516, 4
    %519 = vrot.lane.b32.xlu0 %v518, 32
    %v520 = vpop.permute.xlu0 %519
    %v521 = vsel %vm160, %v520, 0
    %523 = vmatprep.subr.mxu0 0.0
    %524 = vmatpush1.msra.mxu0 %v129
    %525 = vmatprep.subr.mxu0 0.0
    %526 = vmatpush1.msra.mxu0 %v130
    %527 = vmatprep.subr.mxu0 0.0
    %528 = vmatpush1.msra.mxu0 %v131
    %529 = vmatprep.subr.mxu0 0.0
    %530 = vmatpush1.msra.mxu0 %v132
    %531 = vmatprep.subr.mxu0 0.0
    %532 = vmatpush1.msra.mxu0 0.0
    %533 = vmatprep.subr.mxu0 0.0
    %534 = vmatpush1.msra.mxu0 0.0
    %535 = vmatprep.subr.mxu0 0.0
    %536 = vmatpush1.msra.mxu0 0.0
    %537 = vmatprep.subr.mxu0 0.0
    %538 = vmatpush1.msra.mxu0 0.0
    %539 = vmatprep.subr.mxu0 0.0
    %540 = vmatpush1.msra.mxu0 0.0
    %541 = vmatprep.subr.mxu0 0.0
    %542 = vmatpush1.msra.mxu0 0.0
    %543 = vmatprep.subr.mxu0 0.0
    %544 = vmatpush1.msra.mxu0 0.0
    %545 = vmatprep.subr.mxu0 0.0
    %546 = vmatpush1.msra.mxu0 0.0
    %547 = vmatprep.subr.mxu0 0.0
    %548 = vmatpush1.msra.mxu0 0.0
    %549 = vmatprep.subr.mxu0 0.0
    %550 = vmatpush1.msra.mxu0 0.0
    %551 = vmatprep.subr.mxu0 0.0
    %552 = vmatpush1.msra.mxu0 0.0
    %553 = vmatprep.subr.mxu0 0.0
    %554 = vmatpush1.msra.mxu0 0.0
    %555 = vmatprep.subr.mxu0 0.0
    %556 = vmatpush1.msra.mxu0 0.0
    %557 = vmatprep.subr.mxu0 0.0
    %558 = vmatpush1.msra.mxu0 0.0
    %559 = vmatprep.subr.mxu0 0.0
    %560 = vmatpush1.msra.mxu0 0.0
    %561 = vmatprep.subr.mxu0 0.0
    %562 = vmatpush1.msra.mxu0 0.0
    %563 = vmatprep.subr.mxu0 0.0
    %564 = vmatpush1.msra.mxu0 0.0
    %565 = vmatprep.subr.mxu0 0.0
    %566 = vmatpush1.msra.mxu0 0.0
    %567 = vmatprep.subr.mxu0 0.0
    %568 = vmatpush1.msra.mxu0 0.0
    %569 = vmatprep.subr.mxu0 0.0
    %570 = vmatpush1.msra.mxu0 0.0
    %571 = vmatprep.subr.mxu0 0.0
    %572 = vmatpush1.msra.mxu0 0.0
    %573 = vmatprep.subr.mxu0 0.0
    %574 = vmatpush1.msra.mxu0 0.0
    %575 = vmatprep.subr.mxu0 0.0
    %576 = vmatpush1.msra.mxu0 0.0
    %577 = vmatprep.subr.mxu0 0.0
    %578 = vmatpush1.msra.mxu0 0.0
    %579 = vmatprep.subr.mxu0 0.0
    %580 = vmatpush1.msra.mxu0 0.0
    %581 = vmatprep.subr.mxu0 0.0
    %582 = vmatpush1.msra.mxu0 0.0
    %583 = vmatprep.subr.mxu0 0.0
    %584 = vmatpush1.msra.mxu0 0.0
    %585 = vmatprep.subr.mxu0 0.0
    %586 = vmatpush1.msra.mxu0 0.0
    %587 = vmatprep.mubr.f32.mxu0 0.0
    %588 = vmatmul.mubr.f32.gmra.mrb[0].mxu0 %v521
    %v589 = vpop.f32.mrb[0].mxu0
    %v590 = vadd.f32 %v156, %v589
    %v591 = vpop.f32.mrb[0].mxu0
    %592 = vdwg.mxu0
    %593 = vst [vmem:[#allocation2 + $0x14] sm:$0x3] %v590
    %594 = vmatprep.subr.mxu0 0.0
    %595 = vmatpush1.msra.mxu0 %v36
    %596 = vmatprep.subr.mxu0 0.0
    %597 = vmatpush1.msra.mxu0 %v37
    %598 = vmatprep.subr.mxu0 0.0
    %599 = vmatpush1.msra.mxu0 %v38
    %600 = vmatprep.subr.mxu0 0.0
    %601 = vmatpush1.msra.mxu0 %v39
    %602 = vmatprep.subr.mxu0 0.0
    %603 = vmatpush1.msra.mxu0 0.0
    %604 = vmatprep.subr.mxu0 0.0
    %605 = vmatpush1.msra.mxu0 0.0
    %606 = vmatprep.subr.mxu0 0.0
    %607 = vmatpush1.msra.mxu0 0.0
    %608 = vmatprep.subr.mxu0 0.0
    %609 = vmatpush1.msra.mxu0 0.0
    %610 = vmatprep.subr.mxu0 0.0
    %611 = vmatpush1.msra.mxu0 0.0
    %612 = vmatprep.subr.mxu0 0.0
    %613 = vmatpush1.msra.mxu0 0.0
    %614 = vmatprep.subr.mxu0 0.0
    %615 = vmatpush1.msra.mxu0 0.0
    %616 = vmatprep.subr.mxu0 0.0
    %617 = vmatpush1.msra.mxu0 0.0
    %618 = vmatprep.subr.mxu0 0.0
    %619 = vmatpush1.msra.mxu0 0.0
    %620 = vmatprep.subr.mxu0 0.0
    %621 = vmatpush1.msra.mxu0 0.0
    %622 = vmatprep.subr.mxu0 0.0
    %623 = vmatpush1.msra.mxu0 0.0
    %624 = vmatprep.subr.mxu0 0.0
    %625 = vmatpush1.msra.mxu0 0.0
    %626 = vmatprep.subr.mxu0 0.0
    %627 = vmatpush1.msra.mxu0 0.0
    %628 = vmatprep.subr.mxu0 0.0
    %629 = vmatpush1.msra.mxu0 0.0
    %630 = vmatprep.subr.mxu0 0.0
    %631 = vmatpush1.msra.mxu0 0.0
    %632 = vmatprep.subr.mxu0 0.0
    %633 = vmatpush1.msra.mxu0 0.0
    %634 = vmatprep.subr.mxu0 0.0
    %635 = vmatpush1.msra.mxu0 0.0
    %636 = vmatprep.subr.mxu0 0.0
    %637 = vmatpush1.msra.mxu0 0.0
    %638 = vmatprep.subr.mxu0 0.0
    %639 = vmatpush1.msra.mxu0 0.0
    %640 = vmatprep.subr.mxu0 0.0
    %641 = vmatpush1.msra.mxu0 0.0
    %642 = vmatprep.subr.mxu0 0.0
    %643 = vmatpush1.msra.mxu0 0.0
    %644 = vmatprep.subr.mxu0 0.0
    %645 = vmatpush1.msra.mxu0 0.0
    %646 = vmatprep.subr.mxu0 0.0
    %647 = vmatpush1.msra.mxu0 0.0
    %648 = vmatprep.subr.mxu0 0.0
    %649 = vmatpush1.msra.mxu0 0.0
    %650 = vmatprep.subr.mxu0 0.0
    %651 = vmatpush1.msra.mxu0 0.0
    %652 = vmatprep.subr.mxu0 0.0
    %653 = vmatpush1.msra.mxu0 0.0
    %654 = vmatprep.subr.mxu0 0.0
    %655 = vmatpush1.msra.mxu0 0.0
    %656 = vmatprep.subr.mxu0 0.0
    %657 = vmatpush1.msra.mxu0 0.0
    %658 = vmatprep.mubr.f32.mxu0 0.0
    %659 = vmatmul.mubr.f32.gmra.mrb[0].mxu0 %v521
    %v660 = vpop.f32.mrb[0].mxu0
    %v661 = vadd.f32 0.0, %v660
    %v662 = vpop.f32.mrb[0].mxu0
    %663 = vdwg.mxu0
    %v665 = vrot.slane %v661, 2
    %v667 = vadd.f32 %v121, %v665
    %v668 = vxor.u32 %v667, 2147483648
    %v669 = vmul.f32 %v668, 1.442695
    %v670 = vpow.pop %v669
    %v671 = vadd.f32 %v670, 1.0
    %v672 = vrcp.pop %v671
    %v673 = vmul.f32 1.0, %v672
    %v674 = vmul.f32 %v673, 2.0
    %v675 = vsub.f32 %v674, 1.0
    %v677 = vrot.slane %v510, 6
    %v679 = vmul.f32 %v673, %v677
    %681 = vrot.lane.b32.xlu0 %v675, 64
    %v682 = vpop.permute.xlu0 %681
    %v684 = vmul.f32 %v673, %v682
    %686 = vrot.lane.b32.xlu0 %v684, 32
    %v687 = vpop.permute.xlu0 %686
    %v689 = vadd.f32 %v679, %v687
    %v690 = vtanh.pop %v689
    %692 = vrot.lane.b32.xlu0 %v690, 64
    %v693 = vpop.permute.xlu0 %692
    %v695 = vmul.f32 %v673, %v693
    %v697 = vrot.slane %v695, 6
    %698 = vrot.lane.b32.xlu0 %v697, 32
    %v699 = vpop.permute.xlu0 %698
    %v700 = vsel %vm160, %v699, 0
    %702 = vmatprep.subr.mxu0 0.0
    %703 = vmatpush1.msra.mxu0 %v129
    %704 = vmatprep.subr.mxu0 0.0
    %705 = vmatpush1.msra.mxu0 %v130
    %706 = vmatprep.subr.mxu0 0.0
    %707 = vmatpush1.msra.mxu0 %v131
    %708 = vmatprep.subr.mxu0 0.0
    %709 = vmatpush1.msra.mxu0 %v132
    %710 = vmatprep.subr.mxu0 0.0
    %711 = vmatpush1.msra.mxu0 0.0
    %712 = vmatprep.subr.mxu0 0.0
    %713 = vmatpush1.msra.mxu0 0.0
    %714 = vmatprep.subr.mxu0 0.0
    %715 = vmatpush1.msra.mxu0 0.0
    %716 = vmatprep.subr.mxu0 0.0
    %717 = vmatpush1.msra.mxu0 0.0
    %718 = vmatprep.subr.mxu0 0.0
    %719 = vmatpush1.msra.mxu0 0.0
    %720 = vmatprep.subr.mxu0 0.0
    %721 = vmatpush1.msra.mxu0 0.0
    %722 = vmatprep.subr.mxu0 0.0
    %723 = vmatpush1.msra.mxu0 0.0
    %724 = vmatprep.subr.mxu0 0.0
    %725 = vmatpush1.msra.mxu0 0.0
    %726 = vmatprep.subr.mxu0 0.0
    %727 = vmatpush1.msra.mxu0 0.0
    %728 = vmatprep.subr.mxu0 0.0
    %729 = vmatpush1.msra.mxu0 0.0
    %730 = vmatprep.subr.mxu0 0.0
    %731 = vmatpush1.msra.mxu0 0.0
    %732 = vmatprep.subr.mxu0 0.0
    %733 = vmatpush1.msra.mxu0 0.0
    %734 = vmatprep.subr.mxu0 0.0
    %735 = vmatpush1.msra.mxu0 0.0
    %736 = vmatprep.subr.mxu0 0.0
    %737 = vmatpush1.msra.mxu0 0.0
    %738 = vmatprep.subr.mxu0 0.0
    %739 = vmatpush1.msra.mxu0 0.0
    %740 = vmatprep.subr.mxu0 0.0
    %741 = vmatpush1.msra.mxu0 0.0
    %742 = vmatprep.subr.mxu0 0.0
    %743 = vmatpush1.msra.mxu0 0.0
    %744 = vmatprep.subr.mxu0 0.0
    %745 = vmatpush1.msra.mxu0 0.0
    %746 = vmatprep.subr.mxu0 0.0
    %747 = vmatpush1.msra.mxu0 0.0
    %748 = vmatprep.subr.mxu0 0.0
    %749 = vmatpush1.msra.mxu0 0.0
    %750 = vmatprep.subr.mxu0 0.0
    %751 = vmatpush1.msra.mxu0 0.0
    %752 = vmatprep.subr.mxu0 0.0
    %753 = vmatpush1.msra.mxu0 0.0
    %754 = vmatprep.subr.mxu0 0.0
    %755 = vmatpush1.msra.mxu0 0.0
    %756 = vmatprep.subr.mxu0 0.0
    %757 = vmatpush1.msra.mxu0 0.0
    %758 = vmatprep.subr.mxu0 0.0
    %759 = vmatpush1.msra.mxu0 0.0
    %760 = vmatprep.subr.mxu0 0.0
    %761 = vmatpush1.msra.mxu0 0.0
    %762 = vmatprep.subr.mxu0 0.0
    %763 = vmatpush1.msra.mxu0 0.0
    %764 = vmatprep.subr.mxu0 0.0
    %765 = vmatpush1.msra.mxu0 0.0
    %766 = vmatprep.mubr.f32.mxu0 0.0
    %767 = vmatmul.mubr.f32.gmra.mrb[0].mxu0 %v700
    %v768 = vpop.f32.mrb[0].mxu0
    %v769 = vadd.f32 %v156, %v768
    %v770 = vpop.f32.mrb[0].mxu0
    %771 = vdwg.mxu0
    %772 = vst [vmem:[#allocation2 + $0x16] sm:$0x3] %v769
    %773 = vmatprep.subr.mxu0 0.0
    %774 = vmatpush1.msra.mxu0 %v36
    %775 = vmatprep.subr.mxu0 0.0
    %776 = vmatpush1.msra.mxu0 %v37
    %777 = vmatprep.subr.mxu0 0.0
    %778 = vmatpush1.msra.mxu0 %v38
    %779 = vmatprep.subr.mxu0 0.0
    %780 = vmatpush1.msra.mxu0 %v39
    %781 = vmatprep.subr.mxu0 0.0
    %782 = vmatpush1.msra.mxu0 0.0
    %783 = vmatprep.subr.mxu0 0.0
    %784 = vmatpush1.msra.mxu0 0.0
    %785 = vmatprep.subr.mxu0 0.0
    %786 = vmatpush1.msra.mxu0 0.0
    %787 = vmatprep.subr.mxu0 0.0
    %788 = vmatpush1.msra.mxu0 0.0
    %789 = vmatprep.subr.mxu0 0.0
    %790 = vmatpush1.msra.mxu0 0.0
    %791 = vmatprep.subr.mxu0 0.0
    %792 = vmatpush1.msra.mxu0 0.0
    %793 = vmatprep.subr.mxu0 0.0
    %794 = vmatpush1.msra.mxu0 0.0
    %795 = vmatprep.subr.mxu0 0.0
    %796 = vmatpush1.msra.mxu0 0.0
    %797 = vmatprep.subr.mxu0 0.0
    %798 = vmatpush1.msra.mxu0 0.0
    %799 = vmatprep.subr.mxu0 0.0
    %800 = vmatpush1.msra.mxu0 0.0
    %801 = vmatprep.subr.mxu0 0.0
    %802 = vmatpush1.msra.mxu0 0.0
    %803 = vmatprep.subr.mxu0 0.0
    %804 = vmatpush1.msra.mxu0 0.0
    %805 = vmatprep.subr.mxu0 0.0
    %806 = vmatpush1.msra.mxu0 0.0
    %807 = vmatprep.subr.mxu0 0.0
    %808 = vmatpush1.msra.mxu0 0.0
    %809 = vmatprep.subr.mxu0 0.0
    %810 = vmatpush1.msra.mxu0 0.0
    %811 = vmatprep.subr.mxu0 0.0
    %812 = vmatpush1.msra.mxu0 0.0
    %813 = vmatprep.subr.mxu0 0.0
    %814 = vmatpush1.msra.mxu0 0.0
    %815 = vmatprep.subr.mxu0 0.0
    %816 = vmatpush1.msra.mxu0 0.0
    %817 = vmatprep.subr.mxu0 0.0
    %818 = vmatpush1.msra.mxu0 0.0
    %819 = vmatprep.subr.mxu0 0.0
    %820 = vmatpush1.msra.mxu0 0.0
    %821 = vmatprep.subr.mxu0 0.0
    %822 = vmatpush1.msra.mxu0 0.0
    %823 = vmatprep.subr.mxu0 0.0
    %824 = vmatpush1.msra.mxu0 0.0
    %825 = vmatprep.subr.mxu0 0.0
    %826 = vmatpush1.msra.mxu0 0.0
    %827 = vmatprep.subr.mxu0 0.0
    %828 = vmatpush1.msra.mxu0 0.0
    %829 = vmatprep.subr.mxu0 0.0
    %830 = vmatpush1.msra.mxu0 0.0
    %831 = vmatprep.subr.mxu0 0.0
    %832 = vmatpush1.msra.mxu0 0.0
    %833 = vmatprep.subr.mxu0 0.0
    %834 = vmatpush1.msra.mxu0 0.0
    %835 = vmatprep.subr.mxu0 0.0
    %836 = vmatpush1.msra.mxu0 0.0
    %837 = vmatprep.mubr.f32.mxu0 0.0
    %838 = vmatmul.mubr.f32.gmra.mrb[0].mxu0 %v700
    %v839 = vpop.f32.mrb[0].mxu0
    %v840 = vadd.f32 0.0, %v839
    %v841 = vpop.f32.mrb[0].mxu0
    %842 = vdwg.mxu0
    %v843 = vadd.f32 %v126, %v840
    %v844 = vxor.u32 %v843, 2147483648
    %v845 = vmul.f32 %v844, 1.442695
    %v846 = vpow.pop %v845
    %v847 = vadd.f32 %v846, 1.0
    %v848 = vrcp.pop %v847
    %v849 = vmul.f32 1.0, %v848
    %v850 = vmul.f32 %v849, 2.0
    %v851 = vsub.f32 %v850, 1.0
    %v853 = vrot.slane %v689, 6
    %v855 = vmul.f32 %v849, %v853
    %857 = vrot.lane.b32.xlu0 %v851, 64
    %v858 = vpop.permute.xlu0 %857
    %v860 = vmul.f32 %v849, %v858
    %862 = vrot.lane.b32.xlu0 %v860, 32
    %v863 = vpop.permute.xlu0 %862
    %v865 = vadd.f32 %v855, %v863
    %v866 = vtanh.pop %v865
    %868 = vrot.lane.b32.xlu0 %v866, 64
    %v869 = vpop.permute.xlu0 %868
    %v871 = vmul.f32 %v849, %v869
    %873 = vrot.lane.b32.xlu0 %v871, 32
    %v874 = vpop.permute.xlu0 %873
    %v875 = vsel %vm160, %v874, 0
    %877 = vmatprep.subr.mxu0 0.0
    %878 = vmatpush1.msra.mxu0 %v129
    %879 = vmatprep.subr.mxu0 0.0
    %880 = vmatpush1.msra.mxu0 %v130
    %881 = vmatprep.subr.mxu0 0.0
    %882 = vmatpush1.msra.mxu0 %v131
    %883 = vmatprep.subr.mxu0 0.0
    %884 = vmatpush1.msra.mxu0 %v132
    %885 = vmatprep.subr.mxu0 0.0
    %886 = vmatpush1.msra.mxu0 0.0
    %887 = vmatprep.subr.mxu0 0.0
    %888 = vmatpush1.msra.mxu0 0.0
    %889 = vmatprep.subr.mxu0 0.0
    %890 = vmatpush1.msra.mxu0 0.0
    %891 = vmatprep.subr.mxu0 0.0
    %892 = vmatpush1.msra.mxu0 0.0
    %893 = vmatprep.subr.mxu0 0.0
    %894 = vmatpush1.msra.mxu0 0.0
    %895 = vmatprep.subr.mxu0 0.0
    %896 = vmatpush1.msra.mxu0 0.0
    %897 = vmatprep.subr.mxu0 0.0
    %898 = vmatpush1.msra.mxu0 0.0
    %899 = vmatprep.subr.mxu0 0.0
    %900 = vmatpush1.msra.mxu0 0.0
    %901 = vmatprep.subr.mxu0 0.0
    %902 = vmatpush1.msra.mxu0 0.0
    %903 = vmatprep.subr.mxu0 0.0
    %904 = vmatpush1.msra.mxu0 0.0
    %905 = vmatprep.subr.mxu0 0.0
    %906 = vmatpush1.msra.mxu0 0.0
    %907 = vmatprep.subr.mxu0 0.0
    %908 = vmatpush1.msra.mxu0 0.0
    %909 = vmatprep.subr.mxu0 0.0
    %910 = vmatpush1.msra.mxu0 0.0
    %911 = vmatprep.subr.mxu0 0.0
    %912 = vmatpush1.msra.mxu0 0.0
    %913 = vmatprep.subr.mxu0 0.0
    %914 = vmatpush1.msra.mxu0 0.0
    %915 = vmatprep.subr.mxu0 0.0
    %916 = vmatpush1.msra.mxu0 0.0
    %917 = vmatprep.subr.mxu0 0.0
    %918 = vmatpush1.msra.mxu0 0.0
    %919 = vmatprep.subr.mxu0 0.0
    %920 = vmatpush1.msra.mxu0 0.0
    %921 = vmatprep.subr.mxu0 0.0
    %922 = vmatpush1.msra.mxu0 0.0
    %923 = vmatprep.subr.mxu0 0.0
    %924 = vmatpush1.msra.mxu0 0.0
    %925 = vmatprep.subr.mxu0 0.0
    %926 = vmatpush1.msra.mxu0 0.0
    %927 = vmatprep.subr.mxu0 0.0
    %928 = vmatpush1.msra.mxu0 0.0
    %929 = vmatprep.subr.mxu0 0.0
    %930 = vmatpush1.msra.mxu0 0.0
    %931 = vmatprep.subr.mxu0 0.0
    %932 = vmatpush1.msra.mxu0 0.0
    %933 = vmatprep.subr.mxu0 0.0
    %934 = vmatpush1.msra.mxu0 0.0
    %935 = vmatprep.subr.mxu0 0.0
    %936 = vmatpush1.msra.mxu0 0.0
    %937 = vmatprep.subr.mxu0 0.0
    %938 = vmatpush1.msra.mxu0 0.0
    %939 = vmatprep.subr.mxu0 0.0
    %940 = vmatpush1.msra.mxu0 0.0
    %941 = vmatprep.mubr.f32.mxu0 0.0
    %942 = vmatmul.mubr.f32.gmra.mrb[0].mxu0 %v875
    %v943 = vpop.f32.mrb[0].mxu0
    %v944 = vadd.f32 %v156, %v943
    %v945 = vpop.f32.mrb[0].mxu0
    %946 = vdwg.mxu0
    %947 = vst [vmem:[#allocation2 + $0x18] sm:$0x3] %v944
    %948 = vmatprep.subr.mxu0 0.0
    %949 = vmatpush1.msra.mxu0 %v36
    %950 = vmatprep.subr.mxu0 0.0
    %951 = vmatpush1.msra.mxu0 %v37
    %952 = vmatprep.subr.mxu0 0.0
    %953 = vmatpush1.msra.mxu0 %v38
    %954 = vmatprep.subr.mxu0 0.0
    %955 = vmatpush1.msra.mxu0 %v39
    %956 = vmatprep.subr.mxu0 0.0
    %957 = vmatpush1.msra.mxu0 0.0
    %958 = vmatprep.subr.mxu0 0.0
    %959 = vmatpush1.msra.mxu0 0.0
    %960 = vmatprep.subr.mxu0 0.0
    %961 = vmatpush1.msra.mxu0 0.0
    %962 = vmatprep.subr.mxu0 0.0
    %963 = vmatpush1.msra.mxu0 0.0
    %964 = vmatprep.subr.mxu0 0.0
    %965 = vmatpush1.msra.mxu0 0.0
    %966 = vmatprep.subr.mxu0 0.0
    %967 = vmatpush1.msra.mxu0 0.0
    %968 = vmatprep.subr.mxu0 0.0
    %969 = vmatpush1.msra.mxu0 0.0
    %970 = vmatprep.subr.mxu0 0.0
    %971 = vmatpush1.msra.mxu0 0.0
    %972 = vmatprep.subr.mxu0 0.0
    %973 = vmatpush1.msra.mxu0 0.0
    %974 = vmatprep.subr.mxu0 0.0
    %975 = vmatpush1.msra.mxu0 0.0
    %976 = vmatprep.subr.mxu0 0.0
    %977 = vmatpush1.msra.mxu0 0.0
    %978 = vmatprep.subr.mxu0 0.0
    %979 = vmatpush1.msra.mxu0 0.0
    %980 = vmatprep.subr.mxu0 0.0
    %981 = vmatpush1.msra.mxu0 0.0
    %982 = vmatprep.subr.mxu0 0.0
    %983 = vmatpush1.msra.mxu0 0.0
    %984 = vmatprep.subr.mxu0 0.0
    %985 = vmatpush1.msra.mxu0 0.0
    %986 = vmatprep.subr.mxu0 0.0
    %987 = vmatpush1.msra.mxu0 0.0
    %988 = vmatprep.subr.mxu0 0.0
    %989 = vmatpush1.msra.mxu0 0.0
    %990 = vmatprep.subr.mxu0 0.0
    %991 = vmatpush1.msra.mxu0 0.0
    %992 = vmatprep.subr.mxu0 0.0
    %993 = vmatpush1.msra.mxu0 0.0
    %994 = vmatprep.subr.mxu0 0.0
    %995 = vmatpush1.msra.mxu0 0.0
    %996 = vmatprep.subr.mxu0 0.0
    %997 = vmatpush1.msra.mxu0 0.0
    %998 = vmatprep.subr.mxu0 0.0
    %999 = vmatpush1.msra.mxu0 0.0
    %1000 = vmatprep.subr.mxu0 0.0
    %1001 = vmatpush1.msra.mxu0 0.0
    %1002 = vmatprep.subr.mxu0 0.0
    %1003 = vmatpush1.msra.mxu0 0.0
    %1004 = vmatprep.subr.mxu0 0.0
    %1005 = vmatpush1.msra.mxu0 0.0
    %1006 = vmatprep.subr.mxu0 0.0
    %1007 = vmatpush1.msra.mxu0 0.0
    %1008 = vmatprep.subr.mxu0 0.0
    %1009 = vmatpush1.msra.mxu0 0.0
    %1010 = vmatprep.subr.mxu0 0.0
    %1011 = vmatpush1.msra.mxu0 0.0
    %1012 = vmatprep.mubr.f32.mxu0 0.0
    %1013 = vmatmul.mubr.f32.gmra.mrb[0].mxu0 %v875
    %v1014 = vpop.f32.mrb[0].mxu0
    %v1015 = vadd.f32 0.0, %v1014
    %v1016 = vpop.f32.mrb[0].mxu0
    %1017 = vdwg.mxu0
    %v1019 = vrot.slane %v1015, 6
    %v1021 = vadd.f32 %v126, %v1019
    %v1022 = vxor.u32 %v1021, 2147483648
    %v1023 = vmul.f32 %v1022, 1.442695
    %v1024 = vpow.pop %v1023
    %v1025 = vadd.f32 %v1024, 1.0
    %v1026 = vrcp.pop %v1025
    %v1027 = vmul.f32 1.0, %v1026
    %v1028 = vmul.f32 %v1027, 2.0
    %v1029 = vsub.f32 %v1028, 1.0
    %v1031 = vrot.slane %v865, 6
    %v1033 = vmul.f32 %v1027, %v1031
    %1035 = vrot.lane.b32.xlu0 %v1029, 64
    %v1036 = vpop.permute.xlu0 %1035
    %v1038 = vmul.f32 %v1027, %v1036
    %1040 = vrot.lane.b32.xlu0 %v1038, 32
    %v1041 = vpop.permute.xlu0 %1040
    %v1043 = vadd.f32 %v1033, %v1041
    %v1044 = vtanh.pop %v1043
    %1046 = vrot.lane.b32.xlu0 %v1044, 64
    %v1047 = vpop.permute.xlu0 %1046
    %v1049 = vmul.f32 %v1027, %v1047
    %v1051 = vrot.slane %v1049, 2
    %1052 = vrot.lane.b32.xlu0 %v1051, 32
    %v1053 = vpop.permute.xlu0 %1052
    %v1054 = vsel %vm160, %v1053, 0
    %1056 = vmatprep.subr.mxu0 0.0
    %1057 = vmatpush1.msra.mxu0 %v129
    %1058 = vmatprep.subr.mxu0 0.0
    %1059 = vmatpush1.msra.mxu0 %v130
    %1060 = vmatprep.subr.mxu0 0.0
    %1061 = vmatpush1.msra.mxu0 %v131
    %1062 = vmatprep.subr.mxu0 0.0
    %1063 = vmatpush1.msra.mxu0 %v132
    %1064 = vmatprep.subr.mxu0 0.0
    %1065 = vmatpush1.msra.mxu0 0.0
    %1066 = vmatprep.subr.mxu0 0.0
    %1067 = vmatpush1.msra.mxu0 0.0
    %1068 = vmatprep.subr.mxu0 0.0
    %1069 = vmatpush1.msra.mxu0 0.0
    %1070 = vmatprep.subr.mxu0 0.0
    %1071 = vmatpush1.msra.mxu0 0.0
    %1072 = vmatprep.subr.mxu0 0.0
    %1073 = vmatpush1.msra.mxu0 0.0
    %1074 = vmatprep.subr.mxu0 0.0
    %1075 = vmatpush1.msra.mxu0 0.0
    %1076 = vmatprep.subr.mxu0 0.0
    %1077 = vmatpush1.msra.mxu0 0.0
    %1078 = vmatprep.subr.mxu0 0.0
    %1079 = vmatpush1.msra.mxu0 0.0
    %1080 = vmatprep.subr.mxu0 0.0
    %1081 = vmatpush1.msra.mxu0 0.0
    %1082 = vmatprep.subr.mxu0 0.0
    %1083 = vmatpush1.msra.mxu0 0.0
    %1084 = vmatprep.subr.mxu0 0.0
    %1085 = vmatpush1.msra.mxu0 0.0
    %1086 = vmatprep.subr.mxu0 0.0
    %1087 = vmatpush1.msra.mxu0 0.0
    %1088 = vmatprep.subr.mxu0 0.0
    %1089 = vmatpush1.msra.mxu0 0.0
    %1090 = vmatprep.subr.mxu0 0.0
    %1091 = vmatpush1.msra.mxu0 0.0
    %1092 = vmatprep.subr.mxu0 0.0
    %1093 = vmatpush1.msra.mxu0 0.0
    %1094 = vmatprep.subr.mxu0 0.0
    %1095 = vmatpush1.msra.mxu0 0.0
    %1096 = vmatprep.subr.mxu0 0.0
    %1097 = vmatpush1.msra.mxu0 0.0
    %1098 = vmatprep.subr.mxu0 0.0
    %1099 = vmatpush1.msra.mxu0 0.0
    %1100 = vmatprep.subr.mxu0 0.0
    %1101 = vmatpush1.msra.mxu0 0.0
    %1102 = vmatprep.subr.mxu0 0.0
    %1103 = vmatpush1.msra.mxu0 0.0
    %1104 = vmatprep.subr.mxu0 0.0
    %1105 = vmatpush1.msra.mxu0 0.0
    %1106 = vmatprep.subr.mxu0 0.0
    %1107 = vmatpush1.msra.mxu0 0.0
    %1108 = vmatprep.subr.mxu0 0.0
    %1109 = vmatpush1.msra.mxu0 0.0
    %1110 = vmatprep.subr.mxu0 0.0
    %1111 = vmatpush1.msra.mxu0 0.0
    %1112 = vmatprep.subr.mxu0 0.0
    %1113 = vmatpush1.msra.mxu0 0.0
    %1114 = vmatprep.subr.mxu0 0.0
    %1115 = vmatpush1.msra.mxu0 0.0
    %1116 = vmatprep.subr.mxu0 0.0
    %1117 = vmatpush1.msra.mxu0 0.0
    %1118 = vmatprep.subr.mxu0 0.0
    %1119 = vmatpush1.msra.mxu0 0.0
    %1120 = vmatprep.mubr.f32.mxu0 0.0
    %1121 = vmatmul.mubr.f32.gmra.mrb[0].mxu0 %v1054
    %v1122 = vpop.f32.mrb[0].mxu0
    %v1123 = vadd.f32 %v156, %v1122
    %v1124 = vpop.f32.mrb[0].mxu0
    %1125 = vdwg.mxu0
    %1126 = vst [vmem:[#allocation2 + $0x1a] sm:$0x3] %v1123
    %1127 = vmatprep.subr.mxu0 0.0
    %1128 = vmatpush1.msra.mxu0 %v36
    %1129 = vmatprep.subr.mxu0 0.0
    %1130 = vmatpush1.msra.mxu0 %v37
    %1131 = vmatprep.subr.mxu0 0.0
    %1132 = vmatpush1.msra.mxu0 %v38
    %1133 = vmatprep.subr.mxu0 0.0
    %1134 = vmatpush1.msra.mxu0 %v39
    %1135 = vmatprep.subr.mxu0 0.0
    %1136 = vmatpush1.msra.mxu0 0.0
    %1137 = vmatprep.subr.mxu0 0.0
    %1138 = vmatpush1.msra.mxu0 0.0
    %1139 = vmatprep.subr.mxu0 0.0
    %1140 = vmatpush1.msra.mxu0 0.0
    %1141 = vmatprep.subr.mxu0 0.0
    %1142 = vmatpush1.msra.mxu0 0.0
    %1143 = vmatprep.subr.mxu0 0.0
    %1144 = vmatpush1.msra.mxu0 0.0
    %1145 = vmatprep.subr.mxu0 0.0
    %1146 = vmatpush1.msra.mxu0 0.0
    %1147 = vmatprep.subr.mxu0 0.0
    %1148 = vmatpush1.msra.mxu0 0.0
    %1149 = vmatprep.subr.mxu0 0.0
    %1150 = vmatpush1.msra.mxu0 0.0
    %1151 = vmatprep.subr.mxu0 0.0
    %1152 = vmatpush1.msra.mxu0 0.0
    %1153 = vmatprep.subr.mxu0 0.0
    %1154 = vmatpush1.msra.mxu0 0.0
    %1155 = vmatprep.subr.mxu0 0.0
    %1156 = vmatpush1.msra.mxu0 0.0
    %1157 = vmatprep.subr.mxu0 0.0
    %1158 = vmatpush1.msra.mxu0 0.0
    %1159 = vmatprep.subr.mxu0 0.0
    %1160 = vmatpush1.msra.mxu0 0.0
    %1161 = vmatprep.subr.mxu0 0.0
    %1162 = vmatpush1.msra.mxu0 0.0
    %1163 = vmatprep.subr.mxu0 0.0
    %1164 = vmatpush1.msra.mxu0 0.0
    %1165 = vmatprep.subr.mxu0 0.0
    %1166 = vmatpush1.msra.mxu0 0.0
    %1167 = vmatprep.subr.mxu0 0.0
    %1168 = vmatpush1.msra.mxu0 0.0
    %1169 = vmatprep.subr.mxu0 0.0
    %1170 = vmatpush1.msra.mxu0 0.0
    %1171 = vmatprep.subr.mxu0 0.0
    %1172 = vmatpush1.msra.mxu0 0.0
    %1173 = vmatprep.subr.mxu0 0.0
    %1174 = vmatpush1.msra.mxu0 0.0
    %1175 = vmatprep.subr.mxu0 0.0
    %1176 = vmatpush1.msra.mxu0 0.0
    %1177 = vmatprep.subr.mxu0 0.0
    %1178 = vmatpush1.msra.mxu0 0.0
    %1179 = vmatprep.subr.mxu0 0.0
    %1180 = vmatpush1.msra.mxu0 0.0
    %1181 = vmatprep.subr.mxu0 0.0
    %1182 = vmatpush1.msra.mxu0 0.0
    %1183 = vmatprep.subr.mxu0 0.0
    %1184 = vmatpush1.msra.mxu0 0.0
    %1185 = vmatprep.subr.mxu0 0.0
    %1186 = vmatpush1.msra.mxu0 0.0
    %1187 = vmatprep.subr.mxu0 0.0
    %1188 = vmatpush1.msra.mxu0 0.0
    %1189 = vmatprep.subr.mxu0 0.0
    %1190 = vmatpush1.msra.mxu0 0.0
    %1191 = vmatprep.mubr.f32.mxu0 0.0
    %1192 = vmatmul.mubr.f32.gmra.mrb[0].mxu0 %v1054
    %v1193 = vpop.f32.mrb[0].mxu0
    %v1194 = vadd.f32 0.0, %v1193
    %v1195 = vpop.f32.mrb[0].mxu0
    %1196 = vdwg.mxu0
    %v1198 = vrot.slane %v1194, 4
    %v1200 = vadd.f32 %v126, %v1198
    %v1201 = vxor.u32 %v1200, 2147483648
    %v1202 = vmul.f32 %v1201, 1.442695
    %v1203 = vpow.pop %v1202
    %v1204 = vadd.f32 %v1203, 1.0
    %v1205 = vrcp.pop %v1204
    %v1206 = vmul.f32 1.0, %v1205
    %v1207 = vmul.f32 %v1206, 2.0
    %v1208 = vsub.f32 %v1207, 1.0
    %v1210 = vrot.slane %v1043, 6
    %v1212 = vmul.f32 %v1206, %v1210
    %1214 = vrot.lane.b32.xlu0 %v1208, 64
    %v1215 = vpop.permute.xlu0 %1214
    %v1217 = vmul.f32 %v1206, %v1215
    %1219 = vrot.lane.b32.xlu0 %v1217, 32
    %v1220 = vpop.permute.xlu0 %1219
    %v1222 = vadd.f32 %v1212, %v1220
    %v1223 = vtanh.pop %v1222
    %1225 = vrot.lane.b32.xlu0 %v1223, 64
    %v1226 = vpop.permute.xlu0 %1225
    %v1228 = vmul.f32 %v1206, %v1226
    %v1230 = vrot.slane %v1228, 4
    %1231 = vrot.lane.b32.xlu0 %v1230, 32
    %v1232 = vpop.permute.xlu0 %1231
    %v1233 = vsel %vm160, %v1232, 0
    %1235 = vmatprep.subr.mxu0 0.0
    %1236 = vmatpush1.msra.mxu0 %v129
    %1237 = vmatprep.subr.mxu0 0.0
    %1238 = vmatpush1.msra.mxu0 %v130
    %1239 = vmatprep.subr.mxu0 0.0
    %1240 = vmatpush1.msra.mxu0 %v131
    %1241 = vmatprep.subr.mxu0 0.0
    %1242 = vmatpush1.msra.mxu0 %v132
    %1243 = vmatprep.subr.mxu0 0.0
    %1244 = vmatpush1.msra.mxu0 0.0
    %1245 = vmatprep.subr.mxu0 0.0
    %1246 = vmatpush1.msra.mxu0 0.0
    %1247 = vmatprep.subr.mxu0 0.0
    %1248 = vmatpush1.msra.mxu0 0.0
    %1249 = vmatprep.subr.mxu0 0.0
    %1250 = vmatpush1.msra.mxu0 0.0
    %1251 = vmatprep.subr.mxu0 0.0
    %1252 = vmatpush1.msra.mxu0 0.0
    %1253 = vmatprep.subr.mxu0 0.0
    %1254 = vmatpush1.msra.mxu0 0.0
    %1255 = vmatprep.subr.mxu0 0.0
    %1256 = vmatpush1.msra.mxu0 0.0
    %1257 = vmatprep.subr.mxu0 0.0
    %1258 = vmatpush1.msra.mxu0 0.0
    %1259 = vmatprep.subr.mxu0 0.0
    %1260 = vmatpush1.msra.mxu0 0.0
    %1261 = vmatprep.subr.mxu0 0.0
    %1262 = vmatpush1.msra.mxu0 0.0
    %1263 = vmatprep.subr.mxu0 0.0
    %1264 = vmatpush1.msra.mxu0 0.0
    %1265 = vmatprep.subr.mxu0 0.0
    %1266 = vmatpush1.msra.mxu0 0.0
    %1267 = vmatprep.subr.mxu0 0.0
    %1268 = vmatpush1.msra.mxu0 0.0
    %1269 = vmatprep.subr.mxu0 0.0
    %1270 = vmatpush1.msra.mxu0 0.0
    %1271 = vmatprep.subr.mxu0 0.0
    %1272 = vmatpush1.msra.mxu0 0.0
    %1273 = vmatprep.subr.mxu0 0.0
    %1274 = vmatpush1.msra.mxu0 0.0
    %1275 = vmatprep.subr.mxu0 0.0
    %1276 = vmatpush1.msra.mxu0 0.0
    %1277 = vmatprep.subr.mxu0 0.0
    %1278 = vmatpush1.msra.mxu0 0.0
    %1279 = vmatprep.subr.mxu0 0.0
    %1280 = vmatpush1.msra.mxu0 0.0
    %1281 = vmatprep.subr.mxu0 0.0
    %1282 = vmatpush1.msra.mxu0 0.0
    %1283 = vmatprep.subr.mxu0 0.0
    %1284 = vmatpush1.msra.mxu0 0.0
    %1285 = vmatprep.subr.mxu0 0.0
    %1286 = vmatpush1.msra.mxu0 0.0
    %1287 = vmatprep.subr.mxu0 0.0
    %1288 = vmatpush1.msra.mxu0 0.0
    %1289 = vmatprep.subr.mxu0 0.0
    %1290 = vmatpush1.msra.mxu0 0.0
    %1291 = vmatprep.subr.mxu0 0.0
    %1292 = vmatpush1.msra.mxu0 0.0
    %1293 = vmatprep.subr.mxu0 0.0
    %1294 = vmatpush1.msra.mxu0 0.0
    %1295 = vmatprep.subr.mxu0 0.0
    %1296 = vmatpush1.msra.mxu0 0.0
    %1297 = vmatprep.subr.mxu0 0.0
    %1298 = vmatpush1.msra.mxu0 0.0
    %1299 = vmatprep.mubr.f32.mxu0 0.0
    %1300 = vmatmul.mubr.f32.gmra.mrb[0].mxu0 %v1233
    %v1301 = vpop.f32.mrb[0].mxu0
    %v1302 = vadd.f32 %v156, %v1301
    %v1303 = vpop.f32.mrb[0].mxu0
    %1304 = vdwg.mxu0
    %1305 = vst [vmem:[#allocation2 + $0x1c] sm:$0x3] %v1302
    %1306 = vmatprep.subr.mxu0 0.0
    %1307 = vmatpush1.msra.mxu0 %v36
    %1308 = vmatprep.subr.mxu0 0.0
    %1309 = vmatpush1.msra.mxu0 %v37
    %1310 = vmatprep.subr.mxu0 0.0
    %1311 = vmatpush1.msra.mxu0 %v38
    %1312 = vmatprep.subr.mxu0 0.0
    %1313 = vmatpush1.msra.mxu0 %v39
    %1314 = vmatprep.subr.mxu0 0.0
    %1315 = vmatpush1.msra.mxu0 0.0
    %1316 = vmatprep.subr.mxu0 0.0
    %1317 = vmatpush1.msra.mxu0 0.0
    %1318 = vmatprep.subr.mxu0 0.0
    %1319 = vmatpush1.msra.mxu0 0.0
    %1320 = vmatprep.subr.mxu0 0.0
    %1321 = vmatpush1.msra.mxu0 0.0
    %1322 = vmatprep.subr.mxu0 0.0
    %1323 = vmatpush1.msra.mxu0 0.0
    %1324 = vmatprep.subr.mxu0 0.0
    %1325 = vmatpush1.msra.mxu0 0.0
    %1326 = vmatprep.subr.mxu0 0.0
    %1327 = vmatpush1.msra.mxu0 0.0
    %1328 = vmatprep.subr.mxu0 0.0
    %1329 = vmatpush1.msra.mxu0 0.0
    %1330 = vmatprep.subr.mxu0 0.0
    %1331 = vmatpush1.msra.mxu0 0.0
    %1332 = vmatprep.subr.mxu0 0.0
    %1333 = vmatpush1.msra.mxu0 0.0
    %1334 = vmatprep.subr.mxu0 0.0
    %1335 = vmatpush1.msra.mxu0 0.0
    %1336 = vmatprep.subr.mxu0 0.0
    %1337 = vmatpush1.msra.mxu0 0.0
    %1338 = vmatprep.subr.mxu0 0.0
    %1339 = vmatpush1.msra.mxu0 0.0
    %1340 = vmatprep.subr.mxu0 0.0
    %1341 = vmatpush1.msra.mxu0 0.0
    %1342 = vmatprep.subr.mxu0 0.0
    %1343 = vmatpush1.msra.mxu0 0.0
    %1344 = vmatprep.subr.mxu0 0.0
    %1345 = vmatpush1.msra.mxu0 0.0
    %1346 = vmatprep.subr.mxu0 0.0
    %1347 = vmatpush1.msra.mxu0 0.0
    %1348 = vmatprep.subr.mxu0 0.0
    %1349 = vmatpush1.msra.mxu0 0.0
    %1350 = vmatprep.subr.mxu0 0.0
    %1351 = vmatpush1.msra.mxu0 0.0
    %1352 = vmatprep.subr.mxu0 0.0
    %1353 = vmatpush1.msra.mxu0 0.0
    %1354 = vmatprep.subr.mxu0 0.0
    %1355 = vmatpush1.msra.mxu0 0.0
    %1356 = vmatprep.subr.mxu0 0.0
    %1357 = vmatpush1.msra.mxu0 0.0
    %1358 = vmatprep.subr.mxu0 0.0
    %1359 = vmatpush1.msra.mxu0 0.0
    %1360 = vmatprep.subr.mxu0 0.0
    %1361 = vmatpush1.msra.mxu0 0.0
    %1362 = vmatprep.subr.mxu0 0.0
    %1363 = vmatpush1.msra.mxu0 0.0
    %1364 = vmatprep.subr.mxu0 0.0
    %1365 = vmatpush1.msra.mxu0 0.0
    %1366 = vmatprep.subr.mxu0 0.0
    %1367 = vmatpush1.msra.mxu0 0.0
    %1368 = vmatprep.subr.mxu0 0.0
    %1369 = vmatpush1.msra.mxu0 0.0
    %1370 = vmatprep.mubr.f32.mxu0 0.0
    %1371 = vmatmul.mubr.f32.gmra.mrb[0].mxu0 %v1233
    %v1372 = vpop.f32.mrb[0].mxu0
    %v1373 = vadd.f32 0.0, %v1372
    %v1374 = vpop.f32.mrb[0].mxu0
    %1375 = vdwg.mxu0
    %v1377 = vrot.slane %v1373, 2
    %v1379 = vadd.f32 %v126, %v1377
    %v1380 = vxor.u32 %v1379, 2147483648
    %v1381 = vmul.f32 %v1380, 1.442695
    %v1382 = vpow.pop %v1381
    %v1383 = vadd.f32 %v1382, 1.0
    %v1384 = vrcp.pop %v1383
    %v1385 = vmul.f32 1.0, %v1384
    %v1386 = vmul.f32 %v1385, 2.0
    %v1387 = vsub.f32 %v1386, 1.0
    %v1389 = vrot.slane %v1222, 6
    %v1391 = vmul.f32 %v1385, %v1389
    %1393 = vrot.lane.b32.xlu0 %v1387, 64
    %v1394 = vpop.permute.xlu0 %1393
    %v1396 = vmul.f32 %v1385, %v1394
    %1398 = vrot.lane.b32.xlu0 %v1396, 32
    %v1399 = vpop.permute.xlu0 %1398
    %v1401 = vadd.f32 %v1391, %v1399
    %v1402 = vtanh.pop %v1401
    %1404 = vrot.lane.b32.xlu0 %v1402, 64
    %v1405 = vpop.permute.xlu0 %1404
    %v1407 = vmul.f32 %v1385, %v1405
    %v1409 = vrot.slane %v1407, 6
    %1410 = vrot.lane.b32.xlu0 %v1409, 32
    %v1411 = vpop.permute.xlu0 %1410
    %v1412 = vsel %vm160, %v1411, 0
    %1414 = vmatprep.subr.mxu0 0.0
    %1415 = vmatpush1.msra.mxu0 %v129
    %1416 = vmatprep.subr.mxu0 0.0
    %1417 = vmatpush1.msra.mxu0 %v130
    %1418 = vmatprep.subr.mxu0 0.0
    %1419 = vmatpush1.msra.mxu0 %v131
    %1420 = vmatprep.subr.mxu0 0.0
    %1421 = vmatpush1.msra.mxu0 %v132
    %1422 = vmatprep.subr.mxu0 0.0
    %1423 = vmatpush1.msra.mxu0 0.0
    %1424 = vmatprep.subr.mxu0 0.0
    %1425 = vmatpush1.msra.mxu0 0.0
    %1426 = vmatprep.subr.mxu0 0.0
    %1427 = vmatpush1.msra.mxu0 0.0
    %1428 = vmatprep.subr.mxu0 0.0
    %1429 = vmatpush1.msra.mxu0 0.0
    %1430 = vmatprep.subr.mxu0 0.0
    %1431 = vmatpush1.msra.mxu0 0.0
    %1432 = vmatprep.subr.mxu0 0.0
    %1433 = vmatpush1.msra.mxu0 0.0
    %1434 = vmatprep.subr.mxu0 0.0
    %1435 = vmatpush1.msra.mxu0 0.0
    %1436 = vmatprep.subr.mxu0 0.0
    %1437 = vmatpush1.msra.mxu0 0.0
    %1438 = vmatprep.subr.mxu0 0.0
    %1439 = vmatpush1.msra.mxu0 0.0
    %1440 = vmatprep.subr.mxu0 0.0
    %1441 = vmatpush1.msra.mxu0 0.0
    %1442 = vmatprep.subr.mxu0 0.0
    %1443 = vmatpush1.msra.mxu0 0.0
    %1444 = vmatprep.subr.mxu0 0.0
    %1445 = vmatpush1.msra.mxu0 0.0
    %1446 = vmatprep.subr.mxu0 0.0
    %1447 = vmatpush1.msra.mxu0 0.0
    %1448 = vmatprep.subr.mxu0 0.0
    %1449 = vmatpush1.msra.mxu0 0.0
    %1450 = vmatprep.subr.mxu0 0.0
    %1451 = vmatpush1.msra.mxu0 0.0
    %1452 = vmatprep.subr.mxu0 0.0
    %1453 = vmatpush1.msra.mxu0 0.0
    %1454 = vmatprep.subr.mxu0 0.0
    %1455 = vmatpush1.msra.mxu0 0.0
    %1456 = vmatprep.subr.mxu0 0.0
    %1457 = vmatpush1.msra.mxu0 0.0
    %1458 = vmatprep.subr.mxu0 0.0
    %1459 = vmatpush1.msra.mxu0 0.0
    %1460 = vmatprep.subr.mxu0 0.0
    %1461 = vmatpush1.msra.mxu0 0.0
    %1462 = vmatprep.subr.mxu0 0.0
    %1463 = vmatpush1.msra.mxu0 0.0
    %1464 = vmatprep.subr.mxu0 0.0
    %1465 = vmatpush1.msra.mxu0 0.0
    %1466 = vmatprep.subr.mxu0 0.0
    %1467 = vmatpush1.msra.mxu0 0.0
    %1468 = vmatprep.subr.mxu0 0.0
    %1469 = vmatpush1.msra.mxu0 0.0
    %1470 = vmatprep.subr.mxu0 0.0
    %1471 = vmatpush1.msra.mxu0 0.0
    %1472 = vmatprep.subr.mxu0 0.0
    %1473 = vmatpush1.msra.mxu0 0.0
    %1474 = vmatprep.subr.mxu0 0.0
    %1475 = vmatpush1.msra.mxu0 0.0
    %1476 = vmatprep.subr.mxu0 0.0
    %1477 = vmatpush1.msra.mxu0 0.0
    %1478 = vmatprep.mubr.f32.mxu0 0.0
    %1479 = vmatmul.mubr.f32.gmra.mrb[0].mxu0 %v1412
    %v1480 = vpop.f32.mrb[0].mxu0
    %v1481 = vadd.f32 %v156, %v1480
    %v1482 = vpop.f32.mrb[0].mxu0
    %1483 = vdwg.mxu0
    %1484 = vst [vmem:[#allocation2 + $0x1e] sm:$0x3] %v1481
    %vm1485 = vcmask 1048326
    %v1486 = vsel %vm1485, %v1407, -inf
    %1487 = vmax.xlane.f32.xlu0 %v1486
    %v1488 = vpop.xlane.xlu0 %1487
    %v1489 = vsub.f32 %v1407, %v1488
    %v1490 = vmul.f32 %v1489, 1.442695
    %v1491 = vpow.pop %v1490
    %1493 = vrot.lane.b32.xlu0 %v1491, 32
    %v1494 = vpop.permute.xlu0 %1493
    %vm1496 = vcmask 261126
    %v1497 = vsel %vm1496, %v1494, 0.0
    %1498 = vadd.xlane.f32.xlu0 %v1497
    %v1499 = vpop.xlane.xlu0 %1498
    %v1500 = vrcp.pop %v1499
    %v1501 = vmul.f32 %v1491, %v1500
    %v1502 = vlaneseq
    %v1503 = vshrl.u32 %v1502, 7
    %v1504 = vsub.s32 0, %v1503
    %v1505 = vrot.slane %v35, %v1504
    %v1507 = vrot.slane %v1501, 6
    %1508 = vrot.lane.b32.xlu0 %v1507, 32
    %v1509 = vpop.permute.xlu0 %1508
    %v1510 = vsel %vm160, %v1509, 0
    %1512 = vmatprep.subr.mxu0 0.0
    %1513 = vmatpush1.msra.mxu0 %v31
    %1514 = vmatprep.subr.mxu0 0.0
    %1515 = vmatpush1.msra.mxu0 %v32
    %1516 = vmatprep.subr.mxu0 0.0
    %1517 = vmatpush1.msra.mxu0 %v33
    %1518 = vmatprep.subr.mxu0 0.0
    %1519 = vmatpush1.msra.mxu0 %v34
    %1520 = vmatprep.subr.mxu0 0.0
    %1521 = vmatpush1.msra.mxu0 0.0
    %1522 = vmatprep.subr.mxu0 0.0
    %1523 = vmatpush1.msra.mxu0 0.0
    %1524 = vmatprep.subr.mxu0 0.0
    %1525 = vmatpush1.msra.mxu0 0.0
    %1526 = vmatprep.subr.mxu0 0.0
    %1527 = vmatpush1.msra.mxu0 0.0
    %1528 = vmatprep.subr.mxu0 0.0
    %1529 = vmatpush1.msra.mxu0 0.0
    %1530 = vmatprep.subr.mxu0 0.0
    %1531 = vmatpush1.msra.mxu0 0.0
    %1532 = vmatprep.subr.mxu0 0.0
    %1533 = vmatpush1.msra.mxu0 0.0
    %1534 = vmatprep.subr.mxu0 0.0
    %1535 = vmatpush1.msra.mxu0 0.0
    %1536 = vmatprep.subr.mxu0 0.0
    %1537 = vmatpush1.msra.mxu0 0.0
    %1538 = vmatprep.subr.mxu0 0.0
    %1539 = vmatpush1.msra.mxu0 0.0
    %1540 = vmatprep.subr.mxu0 0.0
    %1541 = vmatpush1.msra.mxu0 0.0
    %1542 = vmatprep.subr.mxu0 0.0
    %1543 = vmatpush1.msra.mxu0 0.0
    %1544 = vmatprep.subr.mxu0 0.0
    %1545 = vmatpush1.msra.mxu0 0.0
    %1546 = vmatprep.subr.mxu0 0.0
    %1547 = vmatpush1.msra.mxu0 0.0
    %1548 = vmatprep.subr.mxu0 0.0
    %1549 = vmatpush1.msra.mxu0 0.0
    %1550 = vmatprep.subr.mxu0 0.0
    %1551 = vmatpush1.msra.mxu0 0.0
    %1552 = vmatprep.subr.mxu0 0.0
    %1553 = vmatpush1.msra.mxu0 0.0
    %1554 = vmatprep.subr.mxu0 0.0
    %1555 = vmatpush1.msra.mxu0 0.0
    %1556 = vmatprep.subr.mxu0 0.0
    %1557 = vmatpush1.msra.mxu0 0.0
    %1558 = vmatprep.subr.mxu0 0.0
    %1559 = vmatpush1.msra.mxu0 0.0
    %1560 = vmatprep.subr.mxu0 0.0
    %1561 = vmatpush1.msra.mxu0 0.0
    %1562 = vmatprep.subr.mxu0 0.0
    %1563 = vmatpush1.msra.mxu0 0.0
    %1564 = vmatprep.subr.mxu0 0.0
    %1565 = vmatpush1.msra.mxu0 0.0
    %1566 = vmatprep.subr.mxu0 0.0
    %1567 = vmatpush1.msra.mxu0 0.0
    %1568 = vmatprep.subr.mxu0 0.0
    %1569 = vmatpush1.msra.mxu0 0.0
    %1570 = vmatprep.subr.mxu0 0.0
    %1571 = vmatpush1.msra.mxu0 0.0
    %1572 = vmatprep.subr.mxu0 0.0
    %1573 = vmatpush1.msra.mxu0 0.0
    %1574 = vmatprep.subr.mxu0 0.0
    %1575 = vmatpush1.msra.mxu0 0.0
    %1576 = vmatprep.mubr.f32.mxu0 0.0
    %1577 = vmatmul.mubr.f32.gmra.mrb[0].mxu0 %v1510
    %v1578 = vpop.f32.mrb[0].mxu0
    %v1579 = vadd.f32 %v1505, %v1578
    %v1580 = vpop.f32.mrb[0].mxu0
    %1581 = vdwg.mxu0
    %1582 = vst [vmem:[#allocation6] sm:$0x3] %v1579
    %v1583 = vld [vmem:[#allocation3 + $0x50] sm:$0xff]
    %v1584 = vld [vmem:[#allocation3 + $0x58] sm:$0xff]
    %v1585 = vld [vmem:[#allocation3 + $0x60] sm:$0xff]
    %v1586 = vld [vmem:[#allocation3 + $0x68] sm:$0xff]
    %v1587 = vld [vmem:[#allocation2 + $0x10] sm:$0x3]
    %v1588 = vxor.u32 %v1587, 2147483648
    %v1589 = vmul.f32 %v1588, 1.442695
    %v1590 = vpow.pop %v1589
    %v1591 = vadd.f32 %v1590, 1.0
    %v1592 = vrcp.pop %v1591
    %v1593 = vmul.f32 1.0, %v1592
    %v1594 = vmul.f32 %v1593, 2.0
    %v1595 = vsub.f32 %v1594, 1.0
    %1597 = vrot.lane.b32.xlu0 %v1595, 64
    %v1598 = vpop.permute.xlu0 %1597
    %v1600 = vmul.f32 %v1593, %v1598
    %v1601 = vtanh.pop %v1600
    %1603 = vrot.lane.b32.xlu0 %v1601, 96
    %v1604 = vpop.permute.xlu0 %1603
    %v1606 = vmul.f32 %v1593, %v1604
    %v1607 = vld [vmem:[#allocation2 + $0x12] sm:$0x3]
    %1609 = vrot.lane.b32.xlu0 %v1606, 32
    %v1610 = vpop.permute.xlu0 %1609
    %v1611 = vsel %vm160, %v1610, 0
    %1613 = vmatprep.subr.mxu0 0.0
    %1614 = vmatpush1.msra.mxu0 %v1583
    %1615 = vmatprep.subr.mxu0 0.0
    %1616 = vmatpush1.msra.mxu0 %v1584
    %1617 = vmatprep.subr.mxu0 0.0
    %1618 = vmatpush1.msra.mxu0 %v1585
    %1619 = vmatprep.subr.mxu0 0.0
    %1620 = vmatpush1.msra.mxu0 %v1586
    %1621 = vmatprep.subr.mxu0 0.0
    %1622 = vmatpush1.msra.mxu0 0.0
    %1623 = vmatprep.subr.mxu0 0.0
    %1624 = vmatpush1.msra.mxu0 0.0
    %1625 = vmatprep.subr.mxu0 0.0
    %1626 = vmatpush1.msra.mxu0 0.0
    %1627 = vmatprep.subr.mxu0 0.0
    %1628 = vmatpush1.msra.mxu0 0.0
    %1629 = vmatprep.subr.mxu0 0.0
    %1630 = vmatpush1.msra.mxu0 0.0
    %1631 = vmatprep.subr.mxu0 0.0
    %1632 = vmatpush1.msra.mxu0 0.0
    %1633 = vmatprep.subr.mxu0 0.0
    %1634 = vmatpush1.msra.mxu0 0.0
    %1635 = vmatprep.subr.mxu0 0.0
    %1636 = vmatpush1.msra.mxu0 0.0
    %1637 = vmatprep.subr.mxu0 0.0
    %1638 = vmatpush1.msra.mxu0 0.0
    %1639 = vmatprep.subr.mxu0 0.0
    %1640 = vmatpush1.msra.mxu0 0.0
    %1641 = vmatprep.subr.mxu0 0.0
    %1642 = vmatpush1.msra.mxu0 0.0
    %1643 = vmatprep.subr.mxu0 0.0
    %1644 = vmatpush1.msra.mxu0 0.0
    %1645 = vmatprep.subr.mxu0 0.0
    %1646 = vmatpush1.msra.mxu0 0.0
    %1647 = vmatprep.subr.mxu0 0.0
    %1648 = vmatpush1.msra.mxu0 0.0
    %1649 = vmatprep.subr.mxu0 0.0
    %1650 = vmatpush1.msra.mxu0 0.0
    %1651 = vmatprep.subr.mxu0 0.0
    %1652 = vmatpush1.msra.mxu0 0.0
    %1653 = vmatprep.subr.mxu0 0.0
    %1654 = vmatpush1.msra.mxu0 0.0
    %1655 = vmatprep.subr.mxu0 0.0
    %1656 = vmatpush1.msra.mxu0 0.0
    %1657 = vmatprep.subr.mxu0 0.0
    %1658 = vmatpush1.msra.mxu0 0.0
    %1659 = vmatprep.subr.mxu0 0.0
    %1660 = vmatpush1.msra.mxu0 0.0
    %1661 = vmatprep.subr.mxu0 0.0
    %1662 = vmatpush1.msra.mxu0 0.0
    %1663 = vmatprep.subr.mxu0 0.0
    %1664 = vmatpush1.msra.mxu0 0.0
    %1665 = vmatprep.subr.mxu0 0.0
    %1666 = vmatpush1.msra.mxu0 0.0
    %1667 = vmatprep.subr.mxu0 0.0
    %1668 = vmatpush1.msra.mxu0 0.0
    %1669 = vmatprep.subr.mxu0 0.0
    %1670 = vmatpush1.msra.mxu0 0.0
    %1671 = vmatprep.subr.mxu0 0.0
    %1672 = vmatpush1.msra.mxu0 0.0
    %1673 = vmatprep.subr.mxu0 0.0
    %1674 = vmatpush1.msra.mxu0 0.0
    %1675 = vmatprep.subr.mxu0 0.0
    %1676 = vmatpush1.msra.mxu0 0.0
    %1677 = vmatprep.mubr.f32.mxu0 0.0
    %1678 = vmatmul.mubr.f32.gmra.mrb[0].mxu0 %v1611
    %v1679 = vpop.f32.mrb[0].mxu0
    %v1680 = vadd.f32 0.0, %v1679
    %v1681 = vpop.f32.mrb[0].mxu0
    %1682 = vdwg.mxu0
    %v1683 = vadd.f32 %v1607, %v1680
    %v1684 = vxor.u32 %v1683, 2147483648
    %v1685 = vmul.f32 %v1684, 1.442695
    %v1686 = vpow.pop %v1685
    %v1687 = vadd.f32 %v1686, 1.0
    %v1688 = vrcp.pop %v1687
    %v1689 = vmul.f32 1.0, %v1688
    %v1690 = vmul.f32 %v1689, 2.0
    %v1691 = vsub.f32 %v1690, 1.0
    %1693 = vrot.lane.b32.xlu0 %v1600, 32
    %v1694 = vpop.permute.xlu0 %1693
    %v1696 = vmul.f32 %v1689, %v1694
    %1698 = vrot.lane.b32.xlu0 %v1691, 64
    %v1699 = vpop.permute.xlu0 %1698
    %v1701 = vmul.f32 %v1689, %v1699
    %1703 = vrot.lane.b32.xlu0 %v1701, 32
    %v1704 = vpop.permute.xlu0 %1703
    %v1706 = vadd.f32 %v1696, %v1704
    %v1707 = vtanh.pop %v1706
    %1709 = vrot.lane.b32.xlu0 %v1707, 64
    %v1710 = vpop.permute.xlu0 %1709
    %v1712 = vmul.f32 %v1689, %v1710
    %v1713 = vld [vmem:[#allocation2 + $0x14] sm:$0x3]
    %1715 = vrot.lane.b32.xlu0 %v1712, 32
    %v1716 = vpop.permute.xlu0 %1715
    %v1717 = vsel %vm160, %v1716, 0
    %1719 = vmatprep.subr.mxu0 0.0
    %1720 = vmatpush1.msra.mxu0 %v1583
    %1721 = vmatprep.subr.mxu0 0.0
    %1722 = vmatpush1.msra.mxu0 %v1584
    %1723 = vmatprep.subr.mxu0 0.0
    %1724 = vmatpush1.msra.mxu0 %v1585
    %1725 = vmatprep.subr.mxu0 0.0
    %1726 = vmatpush1.msra.mxu0 %v1586
    %1727 = vmatprep.subr.mxu0 0.0
    %1728 = vmatpush1.msra.mxu0 0.0
    %1729 = vmatprep.subr.mxu0 0.0
    %1730 = vmatpush1.msra.mxu0 0.0
    %1731 = vmatprep.subr.mxu0 0.0
    %1732 = vmatpush1.msra.mxu0 0.0
    %1733 = vmatprep.subr.mxu0 0.0
    %1734 = vmatpush1.msra.mxu0 0.0
    %1735 = vmatprep.subr.mxu0 0.0
    %1736 = vmatpush1.msra.mxu0 0.0
    %1737 = vmatprep.subr.mxu0 0.0
    %1738 = vmatpush1.msra.mxu0 0.0
    %1739 = vmatprep.subr.mxu0 0.0
    %1740 = vmatpush1.msra.mxu0 0.0
    %1741 = vmatprep.subr.mxu0 0.0
    %1742 = vmatpush1.msra.mxu0 0.0
    %1743 = vmatprep.subr.mxu0 0.0
    %1744 = vmatpush1.msra.mxu0 0.0
    %1745 = vmatprep.subr.mxu0 0.0
    %1746 = vmatpush1.msra.mxu0 0.0
    %1747 = vmatprep.subr.mxu0 0.0
    %1748 = vmatpush1.msra.mxu0 0.0
    %1749 = vmatprep.subr.mxu0 0.0
    %1750 = vmatpush1.msra.mxu0 0.0
    %1751 = vmatprep.subr.mxu0 0.0
    %1752 = vmatpush1.msra.mxu0 0.0
    %1753 = vmatprep.subr.mxu0 0.0
    %1754 = vmatpush1.msra.mxu0 0.0
    %1755 = vmatprep.subr.mxu0 0.0
    %1756 = vmatpush1.msra.mxu0 0.0
    %1757 = vmatprep.subr.mxu0 0.0
    %1758 = vmatpush1.msra.mxu0 0.0
    %1759 = vmatprep.subr.mxu0 0.0
    %1760 = vmatpush1.msra.mxu0 0.0
    %1761 = vmatprep.subr.mxu0 0.0
    %1762 = vmatpush1.msra.mxu0 0.0
    %1763 = vmatprep.subr.mxu0 0.0
    %1764 = vmatpush1.msra.mxu0 0.0
    %1765 = vmatprep.subr.mxu0 0.0
    %1766 = vmatpush1.msra.mxu0 0.0
    %1767 = vmatprep.subr.mxu0 0.0
    %1768 = vmatpush1.msra.mxu0 0.0
    %1769 = vmatprep.subr.mxu0 0.0
    %1770 = vmatpush1.msra.mxu0 0.0
    %1771 = vmatprep.subr.mxu0 0.0
    %1772 = vmatpush1.msra.mxu0 0.0
    %1773 = vmatprep.subr.mxu0 0.0
    %1774 = vmatpush1.msra.mxu0 0.0
    %1775 = vmatprep.subr.mxu0 0.0
    %1776 = vmatpush1.msra.mxu0 0.0
    %1777 = vmatprep.subr.mxu0 0.0
    %1778 = vmatpush1.msra.mxu0 0.0
    %1779 = vmatprep.subr.mxu0 0.0
    %1780 = vmatpush1.msra.mxu0 0.0
    %1781 = vmatprep.subr.mxu0 0.0
    %1782 = vmatpush1.msra.mxu0 0.0
    %1783 = vmatprep.mubr.f32.mxu0 0.0
    %1784 = vmatmul.mubr.f32.gmra.mrb[0].mxu0 %v1717
    %v1785 = vpop.f32.mrb[0].mxu0
    %v1786 = vadd.f32 0.0, %v1785
    %v1787 = vpop.f32.mrb[0].mxu0
    %1788 = vdwg.mxu0
    %v1789 = vadd.f32 %v1713, %v1786
    %v1790 = vxor.u32 %v1789, 2147483648
    %v1791 = vmul.f32 %v1790, 1.442695
    %v1792 = vpow.pop %v1791
    %v1793 = vadd.f32 %v1792, 1.0
    %v1794 = vrcp.pop %v1793
    %v1795 = vmul.f32 1.0, %v1794
    %v1796 = vmul.f32 %v1795, 2.0
    %v1797 = vsub.f32 %v1796, 1.0
    %v1798 = vmul.f32 %v1795, %v1706
    %1800 = vrot.lane.b32.xlu0 %v1797, 64
    %v1801 = vpop.permute.xlu0 %1800
    %v1803 = vmul.f32 %v1795, %v1801
    %1805 = vrot.lane.b32.xlu0 %v1803, 32
    %v1806 = vpop.permute.xlu0 %1805
    %v1808 = vadd.f32 %v1798, %v1806
    %v1809 = vtanh.pop %v1808
    %1811 = vrot.lane.b32.xlu0 %v1809, 64
    %v1812 = vpop.permute.xlu0 %1811
    %v1814 = vmul.f32 %v1795, %v1812
    %v1815 = vld [vmem:[#allocation2 + $0x16] sm:$0x3]
    %1817 = vrot.lane.b32.xlu0 %v1814, 32
    %v1818 = vpop.permute.xlu0 %1817
    %v1819 = vsel %vm160, %v1818, 0
    %1821 = vmatprep.subr.mxu0 0.0
    %1822 = vmatpush1.msra.mxu0 %v1583
    %1823 = vmatprep.subr.mxu0 0.0
    %1824 = vmatpush1.msra.mxu0 %v1584
    %1825 = vmatprep.subr.mxu0 0.0
    %1826 = vmatpush1.msra.mxu0 %v1585
    %1827 = vmatprep.subr.mxu0 0.0
    %1828 = vmatpush1.msra.mxu0 %v1586
    %1829 = vmatprep.subr.mxu0 0.0
    %1830 = vmatpush1.msra.mxu0 0.0
    %1831 = vmatprep.subr.mxu0 0.0
    %1832 = vmatpush1.msra.mxu0 0.0
    %1833 = vmatprep.subr.mxu0 0.0
    %1834 = vmatpush1.msra.mxu0 0.0
    %1835 = vmatprep.subr.mxu0 0.0
    %1836 = vmatpush1.msra.mxu0 0.0
    %1837 = vmatprep.subr.mxu0 0.0
    %1838 = vmatpush1.msra.mxu0 0.0
    %1839 = vmatprep.subr.mxu0 0.0
    %1840 = vmatpush1.msra.mxu0 0.0
    %1841 = vmatprep.subr.mxu0 0.0
    %1842 = vmatpush1.msra.mxu0 0.0
    %1843 = vmatprep.subr.mxu0 0.0
    %1844 = vmatpush1.msra.mxu0 0.0
    %1845 = vmatprep.subr.mxu0 0.0
    %1846 = vmatpush1.msra.mxu0 0.0
    %1847 = vmatprep.subr.mxu0 0.0
    %1848 = vmatpush1.msra.mxu0 0.0
    %1849 = vmatprep.subr.mxu0 0.0
    %1850 = vmatpush1.msra.mxu0 0.0
    %1851 = vmatprep.subr.mxu0 0.0
    %1852 = vmatpush1.msra.mxu0 0.0
    %1853 = vmatprep.subr.mxu0 0.0
    %1854 = vmatpush1.msra.mxu0 0.0
    %1855 = vmatprep.subr.mxu0 0.0
    %1856 = vmatpush1.msra.mxu0 0.0
    %1857 = vmatprep.subr.mxu0 0.0
    %1858 = vmatpush1.msra.mxu0 0.0
    %1859 = vmatprep.subr.mxu0 0.0
    %1860 = vmatpush1.msra.mxu0 0.0
    %1861 = vmatprep.subr.mxu0 0.0
    %1862 = vmatpush1.msra.mxu0 0.0
    %1863 = vmatprep.subr.mxu0 0.0
    %1864 = vmatpush1.msra.mxu0 0.0
    %1865 = vmatprep.subr.mxu0 0.0
    %1866 = vmatpush1.msra.mxu0 0.0
    %1867 = vmatprep.subr.mxu0 0.0
    %1868 = vmatpush1.msra.mxu0 0.0
    %1869 = vmatprep.subr.mxu0 0.0
    %1870 = vmatpush1.msra.mxu0 0.0
    %1871 = vmatprep.subr.mxu0 0.0
    %1872 = vmatpush1.msra.mxu0 0.0
    %1873 = vmatprep.subr.mxu0 0.0
    %1874 = vmatpush1.msra.mxu0 0.0
    %1875 = vmatprep.subr.mxu0 0.0
    %1876 = vmatpush1.msra.mxu0 0.0
    %1877 = vmatprep.subr.mxu0 0.0
    %1878 = vmatpush1.msra.mxu0 0.0
    %1879 = vmatprep.subr.mxu0 0.0
    %1880 = vmatpush1.msra.mxu0 0.0
    %1881 = vmatprep.subr.mxu0 0.0
    %1882 = vmatpush1.msra.mxu0 0.0
    %1883 = vmatprep.subr.mxu0 0.0
    %1884 = vmatpush1.msra.mxu0 0.0
    %1885 = vmatprep.mubr.f32.mxu0 0.0
    %1886 = vmatmul.mubr.f32.gmra.mrb[0].mxu0 %v1819
    %v1887 = vpop.f32.mrb[0].mxu0
    %v1888 = vadd.f32 0.0, %v1887
    %v1889 = vpop.f32.mrb[0].mxu0
    %1890 = vdwg.mxu0
    %v1891 = vadd.f32 %v1815, %v1888
    %v1892 = vxor.u32 %v1891, 2147483648
    %v1893 = vmul.f32 %v1892, 1.442695
    %v1894 = vpow.pop %v1893
    %v1895 = vadd.f32 %v1894, 1.0
    %v1896 = vrcp.pop %v1895
    %v1897 = vmul.f32 1.0, %v1896
    %v1898 = vmul.f32 %v1897, 2.0
    %v1899 = vsub.f32 %v1898, 1.0
    %v1900 = vmul.f32 %v1897, %v1808
    %1902 = vrot.lane.b32.xlu0 %v1899, 64
    %v1903 = vpop.permute.xlu0 %1902
    %v1905 = vmul.f32 %v1897, %v1903
    %1907 = vrot.lane.b32.xlu0 %v1905, 32
    %v1908 = vpop.permute.xlu0 %1907
    %v1910 = vadd.f32 %v1900, %v1908
    %v1911 = vtanh.pop %v1910
    %1913 = vrot.lane.b32.xlu0 %v1911, 64
    %v1914 = vpop.permute.xlu0 %1913
    %v1916 = vmul.f32 %v1897, %v1914
    %v1917 = vld [vmem:[#allocation2 + $0x18] sm:$0x3]
    %1919 = vrot.lane.b32.xlu0 %v1916, 32
    %v1920 = vpop.permute.xlu0 %1919
    %v1921 = vsel %vm160, %v1920, 0
    %1923 = vmatprep.subr.mxu0 0.0
    %1924 = vmatpush1.msra.mxu0 %v1583
    %1925 = vmatprep.subr.mxu0 0.0
    %1926 = vmatpush1.msra.mxu0 %v1584
    %1927 = vmatprep.subr.mxu0 0.0
    %1928 = vmatpush1.msra.mxu0 %v1585
    %1929 = vmatprep.subr.mxu0 0.0
    %1930 = vmatpush1.msra.mxu0 %v1586
    %1931 = vmatprep.subr.mxu0 0.0
    %1932 = vmatpush1.msra.mxu0 0.0
    %1933 = vmatprep.subr.mxu0 0.0
    %1934 = vmatpush1.msra.mxu0 0.0
    %1935 = vmatprep.subr.mxu0 0.0
    %1936 = vmatpush1.msra.mxu0 0.0
    %1937 = vmatprep.subr.mxu0 0.0
    %1938 = vmatpush1.msra.mxu0 0.0
    %1939 = vmatprep.subr.mxu0 0.0
    %1940 = vmatpush1.msra.mxu0 0.0
    %1941 = vmatprep.subr.mxu0 0.0
    %1942 = vmatpush1.msra.mxu0 0.0
    %1943 = vmatprep.subr.mxu0 0.0
    %1944 = vmatpush1.msra.mxu0 0.0
    %1945 = vmatprep.subr.mxu0 0.0
    %1946 = vmatpush1.msra.mxu0 0.0
    %1947 = vmatprep.subr.mxu0 0.0
    %1948 = vmatpush1.msra.mxu0 0.0
    %1949 = vmatprep.subr.mxu0 0.0
    %1950 = vmatpush1.msra.mxu0 0.0
    %1951 = vmatprep.subr.mxu0 0.0
    %1952 = vmatpush1.msra.mxu0 0.0
    %1953 = vmatprep.subr.mxu0 0.0
    %1954 = vmatpush1.msra.mxu0 0.0
    %1955 = vmatprep.subr.mxu0 0.0
    %1956 = vmatpush1.msra.mxu0 0.0
    %1957 = vmatprep.subr.mxu0 0.0
    %1958 = vmatpush1.msra.mxu0 0.0
    %1959 = vmatprep.subr.mxu0 0.0
    %1960 = vmatpush1.msra.mxu0 0.0
    %1961 = vmatprep.subr.mxu0 0.0
    %1962 = vmatpush1.msra.mxu0 0.0
    %1963 = vmatprep.subr.mxu0 0.0
    %1964 = vmatpush1.msra.mxu0 0.0
    %1965 = vmatprep.subr.mxu0 0.0
    %1966 = vmatpush1.msra.mxu0 0.0
    %1967 = vmatprep.subr.mxu0 0.0
    %1968 = vmatpush1.msra.mxu0 0.0
    %1969 = vmatprep.subr.mxu0 0.0
    %1970 = vmatpush1.msra.mxu0 0.0
    %1971 = vmatprep.subr.mxu0 0.0
    %1972 = vmatpush1.msra.mxu0 0.0
    %1973 = vmatprep.subr.mxu0 0.0
    %1974 = vmatpush1.msra.mxu0 0.0
    %1975 = vmatprep.subr.mxu0 0.0
    %1976 = vmatpush1.msra.mxu0 0.0
    %1977 = vmatprep.subr.mxu0 0.0
    %1978 = vmatpush1.msra.mxu0 0.0
    %1979 = vmatprep.subr.mxu0 0.0
    %1980 = vmatpush1.msra.mxu0 0.0
    %1981 = vmatprep.subr.mxu0 0.0
    %1982 = vmatpush1.msra.mxu0 0.0
    %1983 = vmatprep.subr.mxu0 0.0
    %1984 = vmatpush1.msra.mxu0 0.0
    %1985 = vmatprep.subr.mxu0 0.0
    %1986 = vmatpush1.msra.mxu0 0.0
    %1987 = vmatprep.mubr.f32.mxu0 0.0
    %1988 = vmatmul.mubr.f32.gmra.mrb[0].mxu0 %v1921
    %v1989 = vpop.f32.mrb[0].mxu0
    %v1990 = vadd.f32 0.0, %v1989
    %v1991 = vpop.f32.mrb[0].mxu0
    %1992 = vdwg.mxu0
    %v1993 = vadd.f32 %v1917, %v1990
    %v1994 = vxor.u32 %v1993, 2147483648
    %v1995 = vmul.f32 %v1994, 1.442695
    %v1996 = vpow.pop %v1995
    %v1997 = vadd.f32 %v1996, 1.0
    %v1998 = vrcp.pop %v1997
    %v1999 = vmul.f32 1.0, %v1998
    %v2000 = vmul.f32 %v1999, 2.0
    %v2001 = vsub.f32 %v2000, 1.0
    %v2002 = vmul.f32 %v1999, %v1910
    %2004 = vrot.lane.b32.xlu0 %v2001, 64
    %v2005 = vpop.permute.xlu0 %2004
    %v2007 = vmul.f32 %v1999, %v2005
    %2009 = vrot.lane.b32.xlu0 %v2007, 32
    %v2010 = vpop.permute.xlu0 %2009
    %v2012 = vadd.f32 %v2002, %v2010
    %v2013 = vtanh.pop %v2012
    %2015 = vrot.lane.b32.xlu0 %v2013, 64
    %v2016 = vpop.permute.xlu0 %2015
    %v2018 = vmul.f32 %v1999, %v2016
    %v2019 = vld [vmem:[#allocation2 + $0x1a] sm:$0x3]
    %2021 = vrot.lane.b32.xlu0 %v2018, 32
    %v2022 = vpop.permute.xlu0 %2021
    %v2023 = vsel %vm160, %v2022, 0
    %2025 = vmatprep.subr.mxu0 0.0
    %2026 = vmatpush1.msra.mxu0 %v1583
    %2027 = vmatprep.subr.mxu0 0.0
    %2028 = vmatpush1.msra.mxu0 %v1584
    %2029 = vmatprep.subr.mxu0 0.0
    %2030 = vmatpush1.msra.mxu0 %v1585
    %2031 = vmatprep.subr.mxu0 0.0
    %2032 = vmatpush1.msra.mxu0 %v1586
    %2033 = vmatprep.subr.mxu0 0.0
    %2034 = vmatpush1.msra.mxu0 0.0
    %2035 = vmatprep.subr.mxu0 0.0
    %2036 = vmatpush1.msra.mxu0 0.0
    %2037 = vmatprep.subr.mxu0 0.0
    %2038 = vmatpush1.msra.mxu0 0.0
    %2039 = vmatprep.subr.mxu0 0.0
    %2040 = vmatpush1.msra.mxu0 0.0
    %2041 = vmatprep.subr.mxu0 0.0
    %2042 = vmatpush1.msra.mxu0 0.0
    %2043 = vmatprep.subr.mxu0 0.0
    %2044 = vmatpush1.msra.mxu0 0.0
    %2045 = vmatprep.subr.mxu0 0.0
    %2046 = vmatpush1.msra.mxu0 0.0
    %2047 = vmatprep.subr.mxu0 0.0
    %2048 = vmatpush1.msra.mxu0 0.0
    %2049 = vmatprep.subr.mxu0 0.0
    %2050 = vmatpush1.msra.mxu0 0.0
    %2051 = vmatprep.subr.mxu0 0.0
    %2052 = vmatpush1.msra.mxu0 0.0
    %2053 = vmatprep.subr.mxu0 0.0
    %2054 = vmatpush1.msra.mxu0 0.0
    %2055 = vmatprep.subr.mxu0 0.0
    %2056 = vmatpush1.msra.mxu0 0.0
    %2057 = vmatprep.subr.mxu0 0.0
    %2058 = vmatpush1.msra.mxu0 0.0
    %2059 = vmatprep.subr.mxu0 0.0
    %2060 = vmatpush1.msra.mxu0 0.0
    %2061 = vmatprep.subr.mxu0 0.0
    %2062 = vmatpush1.msra.mxu0 0.0
    %2063 = vmatprep.subr.mxu0 0.0
    %2064 = vmatpush1.msra.mxu0 0.0
    %2065 = vmatprep.subr.mxu0 0.0
    %2066 = vmatpush1.msra.mxu0 0.0
    %2067 = vmatprep.subr.mxu0 0.0
    %2068 = vmatpush1.msra.mxu0 0.0
    %2069 = vmatprep.subr.mxu0 0.0
    %2070 = vmatpush1.msra.mxu0 0.0
    %2071 = vmatprep.subr.mxu0 0.0
    %2072 = vmatpush1.msra.mxu0 0.0
    %2073 = vmatprep.subr.mxu0 0.0
    %2074 = vmatpush1.msra.mxu0 0.0
    %2075 = vmatprep.subr.mxu0 0.0
    %2076 = vmatpush1.msra.mxu0 0.0
    %2077 = vmatprep.subr.mxu0 0.0
    %2078 = vmatpush1.msra.mxu0 0.0
    %2079 = vmatprep.subr.mxu0 0.0
    %2080 = vmatpush1.msra.mxu0 0.0
    %2081 = vmatprep.subr.mxu0 0.0
    %2082 = vmatpush1.msra.mxu0 0.0
    %2083 = vmatprep.subr.mxu0 0.0
    %2084 = vmatpush1.msra.mxu0 0.0
    %2085 = vmatprep.subr.mxu0 0.0
    %2086 = vmatpush1.msra.mxu0 0.0
    %2087 = vmatprep.subr.mxu0 0.0
    %2088 = vmatpush1.msra.mxu0 0.0
    %2089 = vmatprep.mubr.f32.mxu0 0.0
    %2090 = vmatmul.mubr.f32.gmra.mrb[0].mxu0 %v2023
    %v2091 = vpop.f32.mrb[0].mxu0
    %v2092 = vadd.f32 0.0, %v2091
    %v2093 = vpop.f32.mrb[0].mxu0
    %2094 = vdwg.mxu0
    %v2095 = vadd.f32 %v2019, %v2092
    %v2096 = vxor.u32 %v2095, 2147483648
    %v2097 = vmul.f32 %v2096, 1.442695
    %v2098 = vpow.pop %v2097
    %v2099 = vadd.f32 %v2098, 1.0
    %v2100 = vrcp.pop %v2099
    %v2101 = vmul.f32 1.0, %v2100
    %v2102 = vmul.f32 %v2101, 2.0
    %v2103 = vsub.f32 %v2102, 1.0
    %v2104 = vmul.f32 %v2101, %v2012
    %2106 = vrot.lane.b32.xlu0 %v2103, 64
    %v2107 = vpop.permute.xlu0 %2106
    %v2109 = vmul.f32 %v2101, %v2107
    %2111 = vrot.lane.b32.xlu0 %v2109, 32
    %v2112 = vpop.permute.xlu0 %2111
    %v2114 = vadd.f32 %v2104, %v2112
    %v2115 = vtanh.pop %v2114
    %2117 = vrot.lane.b32.xlu0 %v2115, 64
    %v2118 = vpop.permute.xlu0 %2117
    %v2120 = vmul.f32 %v2101, %v2118
    %v2121 = vld [vmem:[#allocation2 + $0x1c] sm:$0x3]
    %2123 = vrot.lane.b32.xlu0 %v2120, 32
    %v2124 = vpop.permute.xlu0 %2123
    %v2125 = vsel %vm160, %v2124, 0
    %2127 = vmatprep.subr.mxu0 0.0
    %2128 = vmatpush1.msra.mxu0 %v1583
    %2129 = vmatprep.subr.mxu0 0.0
    %2130 = vmatpush1.msra.mxu0 %v1584
    %2131 = vmatprep.subr.mxu0 0.0
    %2132 = vmatpush1.msra.mxu0 %v1585
    %2133 = vmatprep.subr.mxu0 0.0
    %2134 = vmatpush1.msra.mxu0 %v1586
    %2135 = vmatprep.subr.mxu0 0.0
    %2136 = vmatpush1.msra.mxu0 0.0
    %2137 = vmatprep.subr.mxu0 0.0
    %2138 = vmatpush1.msra.mxu0 0.0
    %2139 = vmatprep.subr.mxu0 0.0
    %2140 = vmatpush1.msra.mxu0 0.0
    %2141 = vmatprep.subr.mxu0 0.0
    %2142 = vmatpush1.msra.mxu0 0.0
    %2143 = vmatprep.subr.mxu0 0.0
    %2144 = vmatpush1.msra.mxu0 0.0
    %2145 = vmatprep.subr.mxu0 0.0
    %2146 = vmatpush1.msra.mxu0 0.0
    %2147 = vmatprep.subr.mxu0 0.0
    %2148 = vmatpush1.msra.mxu0 0.0
    %2149 = vmatprep.subr.mxu0 0.0
    %2150 = vmatpush1.msra.mxu0 0.0
    %2151 = vmatprep.subr.mxu0 0.0
    %2152 = vmatpush1.msra.mxu0 0.0
    %2153 = vmatprep.subr.mxu0 0.0
    %2154 = vmatpush1.msra.mxu0 0.0
    %2155 = vmatprep.subr.mxu0 0.0
    %2156 = vmatpush1.msra.mxu0 0.0
    %2157 = vmatprep.subr.mxu0 0.0
    %2158 = vmatpush1.msra.mxu0 0.0
    %2159 = vmatprep.subr.mxu0 0.0
    %2160 = vmatpush1.msra.mxu0 0.0
    %2161 = vmatprep.subr.mxu0 0.0
    %2162 = vmatpush1.msra.mxu0 0.0
    %2163 = vmatprep.subr.mxu0 0.0
    %2164 = vmatpush1.msra.mxu0 0.0
    %2165 = vmatprep.subr.mxu0 0.0
    %2166 = vmatpush1.msra.mxu0 0.0
    %2167 = vmatprep.subr.mxu0 0.0
    %2168 = vmatpush1.msra.mxu0 0.0
    %2169 = vmatprep.subr.mxu0 0.0
    %2170 = vmatpush1.msra.mxu0 0.0
    %2171 = vmatprep.subr.mxu0 0.0
    %2172 = vmatpush1.msra.mxu0 0.0
    %2173 = vmatprep.subr.mxu0 0.0
    %2174 = vmatpush1.msra.mxu0 0.0
    %2175 = vmatprep.subr.mxu0 0.0
    %2176 = vmatpush1.msra.mxu0 0.0
    %2177 = vmatprep.subr.mxu0 0.0
    %2178 = vmatpush1.msra.mxu0 0.0
    %2179 = vmatprep.subr.mxu0 0.0
    %2180 = vmatpush1.msra.mxu0 0.0
    %2181 = vmatprep.subr.mxu0 0.0
    %2182 = vmatpush1.msra.mxu0 0.0
    %2183 = vmatprep.subr.mxu0 0.0
    %2184 = vmatpush1.msra.mxu0 0.0
    %2185 = vmatprep.subr.mxu0 0.0
    %2186 = vmatpush1.msra.mxu0 0.0
    %2187 = vmatprep.subr.mxu0 0.0
    %2188 = vmatpush1.msra.mxu0 0.0
    %2189 = vmatprep.subr.mxu0 0.0
    %2190 = vmatpush1.msra.mxu0 0.0
    %2191 = vmatprep.mubr.f32.mxu0 0.0
    %2192 = vmatmul.mubr.f32.gmra.mrb[0].mxu0 %v2125
    %v2193 = vpop.f32.mrb[0].mxu0
    %v2194 = vadd.f32 0.0, %v2193
    %v2195 = vpop.f32.mrb[0].mxu0
    %2196 = vdwg.mxu0
    %v2197 = vadd.f32 %v2121, %v2194
    %v2198 = vxor.u32 %v2197, 2147483648
    %v2199 = vmul.f32 %v2198, 1.442695
    %v2200 = vpow.pop %v2199
    %v2201 = vadd.f32 %v2200, 1.0
    %v2202 = vrcp.pop %v2201
    %v2203 = vmul.f32 1.0, %v2202
    %v2204 = vmul.f32 %v2203, 2.0
    %v2205 = vsub.f32 %v2204, 1.0
    %v2206 = vmul.f32 %v2203, %v2114
    %2208 = vrot.lane.b32.xlu0 %v2205, 64
    %v2209 = vpop.permute.xlu0 %2208
    %v2211 = vmul.f32 %v2203, %v2209
    %2213 = vrot.lane.b32.xlu0 %v2211, 32
    %v2214 = vpop.permute.xlu0 %2213
    %v2216 = vadd.f32 %v2206, %v2214
    %v2217 = vtanh.pop %v2216
    %2219 = vrot.lane.b32.xlu0 %v2217, 64
    %v2220 = vpop.permute.xlu0 %2219
    %v2222 = vmul.f32 %v2203, %v2220
    %v2223 = vld [vmem:[#allocation2 + $0x1e] sm:$0x3]
    %2225 = vrot.lane.b32.xlu0 %v2222, 32
    %v2226 = vpop.permute.xlu0 %2225
    %v2227 = vsel %vm160, %v2226, 0
    %2229 = vmatprep.subr.mxu0 0.0
    %2230 = vmatpush1.msra.mxu0 %v1583
    %2231 = vmatprep.subr.mxu0 0.0
    %2232 = vmatpush1.msra.mxu0 %v1584
    %2233 = vmatprep.subr.mxu0 0.0
    %2234 = vmatpush1.msra.mxu0 %v1585
    %2235 = vmatprep.subr.mxu0 0.0
    %2236 = vmatpush1.msra.mxu0 %v1586
    %2237 = vmatprep.subr.mxu0 0.0
    %2238 = vmatpush1.msra.mxu0 0.0
    %2239 = vmatprep.subr.mxu0 0.0
    %2240 = vmatpush1.msra.mxu0 0.0
    %2241 = vmatprep.subr.mxu0 0.0
    %2242 = vmatpush1.msra.mxu0 0.0
    %2243 = vmatprep.subr.mxu0 0.0
    %2244 = vmatpush1.msra.mxu0 0.0
    %2245 = vmatprep.subr.mxu0 0.0
    %2246 = vmatpush1.msra.mxu0 0.0
    %2247 = vmatprep.subr.mxu0 0.0
    %2248 = vmatpush1.msra.mxu0 0.0
    %2249 = vmatprep.subr.mxu0 0.0
    %2250 = vmatpush1.msra.mxu0 0.0
    %2251 = vmatprep.subr.mxu0 0.0
    %2252 = vmatpush1.msra.mxu0 0.0
    %2253 = vmatprep.subr.mxu0 0.0
    %2254 = vmatpush1.msra.mxu0 0.0
    %2255 = vmatprep.subr.mxu0 0.0
    %2256 = vmatpush1.msra.mxu0 0.0
    %2257 = vmatprep.subr.mxu0 0.0
    %2258 = vmatpush1.msra.mxu0 0.0
    %2259 = vmatprep.subr.mxu0 0.0
    %2260 = vmatpush1.msra.mxu0 0.0
    %2261 = vmatprep.subr.mxu0 0.0
    %2262 = vmatpush1.msra.mxu0 0.0
    %2263 = vmatprep.subr.mxu0 0.0
    %2264 = vmatpush1.msra.mxu0 0.0
    %2265 = vmatprep.subr.mxu0 0.0
    %2266 = vmatpush1.msra.mxu0 0.0
    %2267 = vmatprep.subr.mxu0 0.0
    %2268 = vmatpush1.msra.mxu0 0.0
    %2269 = vmatprep.subr.mxu0 0.0
    %2270 = vmatpush1.msra.mxu0 0.0
    %2271 = vmatprep.subr.mxu0 0.0
    %2272 = vmatpush1.msra.mxu0 0.0
    %2273 = vmatprep.subr.mxu0 0.0
    %2274 = vmatpush1.msra.mxu0 0.0
    %2275 = vmatprep.subr.mxu0 0.0
    %2276 = vmatpush1.msra.mxu0 0.0
    %2277 = vmatprep.subr.mxu0 0.0
    %2278 = vmatpush1.msra.mxu0 0.0
    %2279 = vmatprep.subr.mxu0 0.0
    %2280 = vmatpush1.msra.mxu0 0.0
    %2281 = vmatprep.subr.mxu0 0.0
    %2282 = vmatpush1.msra.mxu0 0.0
    %2283 = vmatprep.subr.mxu0 0.0
    %2284 = vmatpush1.msra.mxu0 0.0
    %2285 = vmatprep.subr.mxu0 0.0
    %2286 = vmatpush1.msra.mxu0 0.0
    %2287 = vmatprep.subr.mxu0 0.0
    %2288 = vmatpush1.msra.mxu0 0.0
    %2289 = vmatprep.subr.mxu0 0.0
    %2290 = vmatpush1.msra.mxu0 0.0
    %2291 = vmatprep.subr.mxu0 0.0
    %2292 = vmatpush1.msra.mxu0 0.0
    %2293 = vmatprep.mubr.f32.mxu0 0.0
    %2294 = vmatmul.mubr.f32.gmra.mrb[0].mxu0 %v2227
    %v2295 = vpop.f32.mrb[0].mxu0
    %v2296 = vadd.f32 0.0, %v2295
    %v2297 = vpop.f32.mrb[0].mxu0
    %2298 = vdwg.mxu0
    %v2299 = vadd.f32 %v2223, %v2296
    %v2300 = vxor.u32 %v2299, 2147483648
    %v2301 = vmul.f32 %v2300, 1.442695
    %v2302 = vpow.pop %v2301
    %v2303 = vadd.f32 %v2302, 1.0
    %v2304 = vrcp.pop %v2303
    %v2305 = vmul.f32 1.0, %v2304
    %v2306 = vmul.f32 %v2305, 2.0
    %v2307 = vsub.f32 %v2306, 1.0
    %v2308 = vmul.f32 %v2305, %v2216
    %2310 = vrot.lane.b32.xlu0 %v2307, 64
    %v2311 = vpop.permute.xlu0 %2310
    %v2313 = vmul.f32 %v2305, %v2311
    %2315 = vrot.lane.b32.xlu0 %v2313, 32
    %v2316 = vpop.permute.xlu0 %2315
    %v2318 = vadd.f32 %v2308, %v2316
    %v2319 = vtanh.pop %v2318
    %2321 = vrot.lane.b32.xlu0 %v2319, 64
    %v2322 = vpop.permute.xlu0 %2321
    %v2324 = vmul.f32 %v2305, %v2322
    %vm2325 = vcmask 1042176
    %v2326 = vsel %vm2325, %v2324, -inf
    %2327 = vmax.xlane.f32.xlu0 %v2326
    %v2328 = vpop.xlane.xlu0 %2327
    %v2329 = vsub.f32 %v2324, %v2328
    %v2330 = vmul.f32 %v2329, 1.442695
    %v2331 = vpow.pop %v2330
    %2333 = vrot.lane.b32.xlu0 %v2331, 32
    %v2334 = vpop.permute.xlu0 %2333
    %vm2336 = vcmask 254976
    %v2337 = vsel %vm2336, %v2334, 0.0
    %2338 = vadd.xlane.f32.xlu0 %v2337
    %v2339 = vpop.xlane.xlu0 %2338
    %v2340 = vrcp.pop %v2339
    %v2341 = vmul.f32 %v2331, %v2340
    %2343 = vrot.lane.b32.xlu0 %v2341, 32
    %v2344 = vpop.permute.xlu0 %2343
    %v2345 = vsel %vm160, %v2344, 0
    %2347 = vmatprep.subr.mxu0 0.0
    %2348 = vmatpush1.msra.mxu0 %v31
    %2349 = vmatprep.subr.mxu0 0.0
    %2350 = vmatpush1.msra.mxu0 %v32
    %2351 = vmatprep.subr.mxu0 0.0
    %2352 = vmatpush1.msra.mxu0 %v33
    %2353 = vmatprep.subr.mxu0 0.0
    %2354 = vmatpush1.msra.mxu0 %v34
    %2355 = vmatprep.subr.mxu0 0.0
    %2356 = vmatpush1.msra.mxu0 0.0
    %2357 = vmatprep.subr.mxu0 0.0
    %2358 = vmatpush1.msra.mxu0 0.0
    %2359 = vmatprep.subr.mxu0 0.0
    %2360 = vmatpush1.msra.mxu0 0.0
    %2361 = vmatprep.subr.mxu0 0.0
    %2362 = vmatpush1.msra.mxu0 0.0
    %2363 = vmatprep.subr.mxu0 0.0
    %2364 = vmatpush1.msra.mxu0 0.0
    %2365 = vmatprep.subr.mxu0 0.0
    %2366 = vmatpush1.msra.mxu0 0.0
    %2367 = vmatprep.subr.mxu0 0.0
    %2368 = vmatpush1.msra.mxu0 0.0
    %2369 = vmatprep.subr.mxu0 0.0
    %2370 = vmatpush1.msra.mxu0 0.0
    %2371 = vmatprep.subr.mxu0 0.0
    %2372 = vmatpush1.msra.mxu0 0.0
    %2373 = vmatprep.subr.mxu0 0.0
    %2374 = vmatpush1.msra.mxu0 0.0
    %2375 = vmatprep.subr.mxu0 0.0
    %2376 = vmatpush1.msra.mxu0 0.0
    %2377 = vmatprep.subr.mxu0 0.0
    %2378 = vmatpush1.msra.mxu0 0.0
    %2379 = vmatprep.subr.mxu0 0.0
    %2380 = vmatpush1.msra.mxu0 0.0
    %2381 = vmatprep.subr.mxu0 0.0
    %2382 = vmatpush1.msra.mxu0 0.0
    %2383 = vmatprep.subr.mxu0 0.0
    %2384 = vmatpush1.msra.mxu0 0.0
    %2385 = vmatprep.subr.mxu0 0.0
    %2386 = vmatpush1.msra.mxu0 0.0
    %2387 = vmatprep.subr.mxu0 0.0
    %2388 = vmatpush1.msra.mxu0 0.0
    %2389 = vmatprep.subr.mxu0 0.0
    %2390 = vmatpush1.msra.mxu0 0.0
    %2391 = vmatprep.subr.mxu0 0.0
    %2392 = vmatpush1.msra.mxu0 0.0
    %2393 = vmatprep.subr.mxu0 0.0
    %2394 = vmatpush1.msra.mxu0 0.0
    %2395 = vmatprep.subr.mxu0 0.0
    %2396 = vmatpush1.msra.mxu0 0.0
    %2397 = vmatprep.subr.mxu0 0.0
    %2398 = vmatpush1.msra.mxu0 0.0
    %2399 = vmatprep.subr.mxu0 0.0
    %2400 = vmatpush1.msra.mxu0 0.0
    %2401 = vmatprep.subr.mxu0 0.0
    %2402 = vmatpush1.msra.mxu0 0.0
    %2403 = vmatprep.subr.mxu0 0.0
    %2404 = vmatpush1.msra.mxu0 0.0
    %2405 = vmatprep.subr.mxu0 0.0
    %2406 = vmatpush1.msra.mxu0 0.0
    %2407 = vmatprep.subr.mxu0 0.0
    %2408 = vmatpush1.msra.mxu0 0.0
    %2409 = vmatprep.subr.mxu0 0.0
    %2410 = vmatpush1.msra.mxu0 0.0
    %2411 = vmatprep.mubr.f32.mxu0 0.0
    %2412 = vmatmul.mubr.f32.gmra.mrb[0].mxu0 %v2345
    %v2413 = vpop.f32.mrb[0].mxu0
    %v2414 = vadd.f32 %v1505, %v2413
    %v2415 = vpop.f32.mrb[0].mxu0
    %2416 = vdwg.mxu0
    %2417 = vst [vmem:[#allocation6 + $0x2] sm:$0x3] %v2414
    // Predicated region
    $region18: #{_fused_forward.1} parent=1 // pred_check
      _
    $region19: #{_fused_forward.1} parent=1 // pred_check_branch
      %2419 = sbr.rel (0) target = $region21
    $region20: #{_fused_forward.1} parent=1 // pred_region
      %s2421 = ssub.s32 64, 64
      %2422 = vsyncadd [#allocation5], %s2421
      %s2424 = sshll.u32 [#allocation6], 4
      %s2425 = int_to_ptr.vmem [resolvable:$true] %s2424
      %2427 = dma.vmem_to_hbm [thread:$0]  %s2425, 64, %s3, [#allocation5]
    $region21: #{_fused_forward.1} parent=1 // pred_fallthru
      _
    // Predicated region
    $region22: #{_fused_forward.1} parent=1 // pred_check
      _
    $region23: #{_fused_forward.1} parent=1 // pred_check_branch
      %2429 = sbr.rel (0) target = $region25
    $region24: #{_fused_forward.1} parent=1 // pred_region
      %2430 = dma.done [#allocation5], 64
    $region25: #{_fused_forward.1} parent=1 // pred_fallthru
      _
    %2431 = vsyncpa [#allocation4], 1
    %2432 = vsyncpa [#allocation5], 1

</llo_original>
